<compile_context>
chip_gen: v6e
topology: v6e:2x2x1
jax: 0.10.0
libtpu: 0.0.40
codegen_flags: <defaults>
</compile_context>

<pallas_src>
import functools

import jax
import jax.numpy as jnp
from jax import lax
from jax.experimental import pallas as pl
from jax.experimental.pallas import tpu as pltpu


def _congestion_kernel(x_ref, wih_ref, whh_ref, b_ref,
                       wattn_ref, battn_ref, wfc_ref, bfc_ref,
                       y_ref, *, mxu_dtype):
    Bb, T, D = x_ref.shape
    H = whh_ref.shape[0]
    G = 4 * H

    # ---- hoisted input projection: one (Bb*T, D) @ (D, 4H) matmul + bias ----
    x2 = x_ref[...].reshape(Bb * T, D).astype(mxu_dtype)
    wih = wih_ref[...].astype(mxu_dtype)
    xg = jnp.dot(x2, wih, preferred_element_type=jnp.float32) + b_ref[...]
    xg = xg.reshape(Bb, T, G)                       # (Bb, T, 4H), f32

    whh = whh_ref[...].astype(mxu_dtype)            # (H, 4H)

    # Per-lane scale/offset so all 4 gates use ONE tanh per step:
    #   sigmoid(z) = 0.5*tanh(0.5*z) + 0.5   (i, f, o gates)
    #   tanh(z)    = 1.0*tanh(1.0*z) + 0.0   (g gate)
    col = lax.broadcasted_iota(jnp.int32, (1, G), 1)
    is_g = jnp.logical_and(col >= 2 * H, col < 3 * H)
    scale = jnp.where(is_g, 1.0, 0.5).astype(jnp.float32)
    shift = jnp.where(is_g, 0.0, 0.5).astype(jnp.float32)
    scale = jnp.broadcast_to(scale, (Bb, G))        # hoisted broadcasts
    shift = jnp.broadcast_to(shift, (Bb, G))

    h = jnp.zeros((Bb, H), jnp.float32)
    c = jnp.zeros((Bb, H), jnp.float32)
    hs = []
    for t in range(T):                              # statically unrolled, T small
        gates = xg[:, t, :] + jnp.dot(h.astype(mxu_dtype), whh,
                                      preferred_element_type=jnp.float32)
        act = jnp.tanh(gates * scale) * scale + shift   # one EUP pass, all gates
        i_g = act[:, 0 * H:1 * H]
        f_g = act[:, 1 * H:2 * H]
        g_g = act[:, 2 * H:3 * H]
        o_g = act[:, 3 * H:4 * H]
        c = f_g * c + i_g * g_g
        h = o_g * jnp.tanh(c)
        hs.append(h)                                # vreg-resident, no scratch

    out = jnp.stack(hs, axis=1)                     # (Bb, T, H)

    # ---- attention: Linear(H,1) + softmax over time, via VPU mul + XLU reduce ----
    scores = jnp.sum(out * wattn_ref[...].reshape(1, 1, H), axis=-1)   # (Bb, T)
    scores = scores + battn_ref[...]                # (1,1) broadcast
    m = jnp.max(scores, axis=-1, keepdims=True)
    e = jnp.exp(scores - m)
    denom = jnp.sum(e, axis=-1, keepdims=True)
    r = pl.reciprocal(denom, approx=True)           # EUP fast path ...
    r = r * (2.0 - denom * r)                       # ... + 2 Newton steps ->
    r = r * (2.0 - denom * r)                       #     ~f32 accurate
    attn = e * r                                    # (Bb, T)

    context = jnp.sum(attn[..., None] * out, axis=1)                   # (Bb, H)

    # ---- final Linear(H, 1): multiply + lane reduce (no N=1 MXU matmul) ----
    y_ref[...] = (jnp.sum(context * wfc_ref[...], axis=-1, keepdims=True)
                  + bfc_ref[...])                   # (Bb, 1)


def congestion_predictor(x, params, *, mxu_dtype=jnp.bfloat16, batch_block=None):
    wih_t, whh_t, b, wattn, battn, wfc, bfc = params
    B, T, D = x.shape
    H = whh_t.shape[0]
    G = 4 * H

    if x.shape[-1] != wih_t.shape[0]:               # mirrors the PyTorch check
        raise ValueError(f"Expected {wih_t.shape[0]} features, got {x.shape[-1]}")

    if batch_block is None:
        # Largest power-of-two divisor of B up to 128: gives >=2 grid steps for
        # large batches so v7x's two TensorCores each take a share.
        batch_block = next(bb for bb in (128, 64, 32, 16, 8, 4, 2, 1) if B % bb == 0)
    assert B % batch_block == 0
    nb = B // batch_block

    kernel = functools.partial(_congestion_kernel, mxu_dtype=mxu_dtype)

    grid_spec = pltpu.PrefetchScalarGridSpec(
        num_scalar_prefetch=0,
        grid=(nb,),
        in_specs=[
            pl.BlockSpec((batch_block, T, D), lambda i: (i, 0, 0)),   # x
            pl.BlockSpec((D, G), lambda i: (0, 0)),                   # Wih^T
            pl.BlockSpec((H, G), lambda i: (0, 0)),                   # Whh^T
            pl.BlockSpec((1, G), lambda i: (0, 0)),                   # bias (ih+hh)
            pl.BlockSpec((1, H), lambda i: (0, 0)),                   # attn weight
            pl.BlockSpec((1, 1), lambda i: (0, 0)),                   # attn bias
            pl.BlockSpec((1, H), lambda i: (0, 0)),                   # fc weight
            pl.BlockSpec((1, 1), lambda i: (0, 0)),                   # fc bias
        ],
        out_specs=pl.BlockSpec((batch_block, 1), lambda i: (i, 0)),
    )
    return pl.pallas_call(
        kernel,
        out_shape=jax.ShapeDtypeStruct((B, 1), jnp.float32),
        grid_spec=grid_spec,
        compiler_params=pltpu.CompilerParams(dimension_semantics=("parallel",)),
    )(x, wih_t, whh_t, b, wattn, battn, wfc, bfc)


# ---------------------------------------------------------------------------
# References
# ---------------------------------------------------------------------------

def reference_f32(x, params):
    """Pure-JAX reference with PyTorch f32 semantics (full-precision matmuls)."""
    wih_t, whh_t, b, wattn, battn, wfc, bfc = params
    B, T, D = x.shape
    H = whh_t.shape[0]
    hp = lax.Precision.HIGHEST
    h = jnp.zeros((B, H), jnp.float32)
    c = jnp.zeros((B, H), jnp.float32)
    outs = []
    for t in range(T):
        gates = (jnp.dot(x[:, t, :], wih_t, precision=hp)
                 + jnp.dot(h, whh_t, precision=hp) + b)
        i_g = jax.nn.sigmoid(gates[:, :H])
        f_g = jax.nn.sigmoid(gates[:, H:2 * H])
        g_g = jnp.tanh(gates[:, 2 * H:3 * H])
        o_g = jax.nn.sigmoid(gates[:, 3 * H:])
        c = f_g * c + i_g * g_g
        h = o_g * jnp.tanh(c)
        outs.append(h)
    out = jnp.stack(outs, axis=1)                               # (B, T, H)
    scores = jnp.sum(out * wattn.reshape(1, 1, H), -1) + battn[0, 0]
    attn = jax.nn.softmax(scores, axis=-1)
    context = jnp.sum(attn[..., None] * out, axis=1)
    return jnp.sum(context * wfc, axis=-1, keepdims=True) + bfc


def reference_matched(x, params, mxu_dtype):
    """Reference mirroring the kernel's arithmetic (bf16 MXU operands, f32 acc,
    sigmoid-via-tanh) so the bf16 path can be checked at tight tolerance."""
    wih_t, whh_t, b, wattn, battn, wfc, bfc = params
    B, T, D = x.shape
    H = whh_t.shape[0]
    sig = lambda z: 0.5 * jnp.tanh(0.5 * z) + 0.5
    xg = (jnp.dot(x.reshape(B * T, D).astype(mxu_dtype), wih_t.astype(mxu_dtype),
                  preferred_element_type=jnp.float32) + b).reshape(B, T, 4 * H)
    whh = whh_t.astype(mxu_dtype)
    h = jnp.zeros((B, H), jnp.float32)
    c = jnp.zeros((B, H), jnp.float32)
    outs = []
    for t in range(T):
        gates = xg[:, t, :] + jnp.dot(h.astype(mxu_dtype), whh,
                                      preferred_element_type=jnp.float32)
        i_g = sig(gates[:, :H])
        f_g = sig(gates[:, H:2 * H])
        g_g = jnp.tanh(gates[:, 2 * H:3 * H])
        o_g = sig(gates[:, 3 * H:])
        c = f_g * c + i_g * g_g
        h = o_g * jnp.tanh(c)
        outs.append(h)
    out = jnp.stack(outs, axis=1)
    scores = jnp.sum(out * wattn.reshape(1, 1, H), -1) + battn[0, 0]
    attn = jax.nn.softmax(scores, axis=-1)
    context = jnp.sum(attn[..., None] * out, axis=1)
    return jnp.sum(context * wfc, axis=-1, keepdims=True) + bfc


def init_params(key, input_size, hidden_size):
    """PyTorch-style init; weights pre-laid-out for the kernel."""
    D, H = input_size, hidden_size
    k = 1.0 / jnp.sqrt(H)
    keys = jax.random.split(key, 8)
    u = lambda kk, shape: jax.random.uniform(kk, shape, jnp.float32, -k, k)
    w_ih = u(keys[0], (4 * H, D))            # weight_ih_l0, gate order i,f,g,o
    w_hh = u(keys[1], (4 * H, H))            # weight_hh_l0
    b_ih = u(keys[2], (4 * H,))
    b_hh = u(keys[3], (4 * H,))
    w_attn = u(keys[4], (1, H))              # attention Linear(H, 1).weight
    b_attn = u(keys[5], (1,))
    w_fc = u(keys[6], (1, H))                # fc Linear(H, 1).weight
    b_fc = u(keys[7], (1,))
    return (
        w_ih.T,                              # (D, 4H)
        w_hh.T,                              # (H, 4H)
        (b_ih + b_hh).reshape(1, 4 * H),     # (1, 4H)
        w_attn,                              # (1, H)
        b_attn.reshape(1, 1),                # (1, 1)
        w_fc,                                # (1, H)
        b_fc.reshape(1, 1),                  # (1, 1)
    )


if __name__ == "__main__":
    B, T, D, H = 2, 8, 6, 64                 # input_size=6, hidden_size=64

    key = jax.random.PRNGKey(0)
    kx, kp = jax.random.split(key)
    x = jax.random.normal(kx, (B, T, D), jnp.float32)
    params = init_params(kp, D, H)

    # f32-MXU path: tight check against the exact PyTorch/f32 semantics.
    y_f32 = jax.block_until_ready(
        congestion_predictor(x, params, mxu_dtype=jnp.float32))
    ref32 = reference_f32(x, params)
    assert y_f32.shape == (B, 1)
    assert jnp.allclose(y_f32, ref32, atol=1e-4, rtol=1e-4), (y_f32, ref32)

    # bf16-MXU path (recommended on v6e/v7x): tight check against the
    # matched-precision reference, loose sanity check against full f32.
    y_bf16 = jax.block_until_ready(
        congestion_predictor(x, params, mxu_dtype=jnp.bfloat16))
    refbf = reference_matched(x, params, jnp.bfloat16)
    assert jnp.allclose(y_bf16, refbf, atol=1e-4, rtol=1e-4), (y_bf16, refbf)
    assert jnp.allclose(y_bf16, ref32, atol=1e-1, rtol=1e-1), (y_bf16, ref32)

    print("KERNEL_OK")
</pallas_src>

<mosaic_0001>
module attributes {stable_mosaic.version = 11 : i64} {
  func.func @_congestion_kernel(%arg0: i32, %arg1: memref<2x8x6xf32, #tpu.memory_space<vmem>>, %arg2: memref<6x256xf32, #tpu.memory_space<vmem>>, %arg3: memref<64x256xf32, #tpu.memory_space<vmem>>, %arg4: memref<1x256xf32, #tpu.memory_space<vmem>>, %arg5: memref<1x64xf32, #tpu.memory_space<vmem>>, %arg6: memref<1x1xf32, #tpu.memory_space<vmem>>, %arg7: memref<1x64xf32, #tpu.memory_space<vmem>>, %arg8: memref<1x1xf32, #tpu.memory_space<vmem>>, %arg9: memref<2x1xf32, #tpu.memory_space<vmem>>) attributes {dimension_semantics = [#tpu.dimension_semantics<parallel>], iteration_bounds = array<i64: 1>, scalar_prefetch = 0 : i64, scratch_operands = 0 : i64, tpu.core_type = #tpu.core_type<tc>, window_params = [{transform_indices = @transform_0, window_bounds = array<i64: 2, 8, 6>}, {pipeline_mode = #tpu.pipeline_mode<synchronous>, transform_indices = @transform_1, window_bounds = array<i64: 6, 256>}, {pipeline_mode = #tpu.pipeline_mode<synchronous>, transform_indices = @transform_2, window_bounds = array<i64: 64, 256>}, {pipeline_mode = #tpu.pipeline_mode<synchronous>, transform_indices = @transform_3, window_bounds = array<i64: 1, 256>}, {pipeline_mode = #tpu.pipeline_mode<synchronous>, transform_indices = @transform_4, window_bounds = array<i64: 1, 64>}, {pipeline_mode = #tpu.pipeline_mode<synchronous>, transform_indices = @transform_5, window_bounds = array<i64: 1, 1>}, {pipeline_mode = #tpu.pipeline_mode<synchronous>, transform_indices = @transform_6, window_bounds = array<i64: 1, 64>}, {pipeline_mode = #tpu.pipeline_mode<synchronous>, transform_indices = @transform_7, window_bounds = array<i64: 1, 1>}, {transform_indices = @transform_8, window_bounds = array<i64: 2, 1>}]} {
    %c0 = arith.constant 0 : index
    %c0_0 = arith.constant 0 : index
    %c0_1 = arith.constant 0 : index
    %0 = vector.load %arg1[%c0, %c0_0, %c0_1] : memref<2x8x6xf32, #tpu.memory_space<vmem>>, vector<2x8x6xf32>
    %1 = vector.shape_cast %0 : vector<2x8x6xf32> to vector<16x6xf32>
    %c0_2 = arith.constant 0 : index
    %c0_3 = arith.constant 0 : index
    %2 = vector.load %arg2[%c0_2, %c0_3] : memref<6x256xf32, #tpu.memory_space<vmem>>, vector<6x256xf32>
    %cst = arith.constant dense<0.000000e+00> : vector<16x256xf32>
    %3 = tpu.matmul %1, %2, %cst {dimension_numbers = #tpu.dot_dimension_numbers<[1], [0], [0], [1], [0, 0, 1, 1], [], []>} : vector<16x6xf32>, vector<6x256xf32>, vector<16x256xf32> -> vector<16x256xf32>
    %c0_4 = arith.constant 0 : index
    %c0_5 = arith.constant 0 : index
    %4 = vector.load %arg4[%c0_4, %c0_5] : memref<1x256xf32, #tpu.memory_space<vmem>>, vector<1x256xf32>
    %5 = vector.broadcast %4 : vector<1x256xf32> to vector<16x256xf32>
    %6 = arith.addf %3, %5 : vector<16x256xf32>
    %7 = vector.shape_cast %6 : vector<16x256xf32> to vector<2x8x256xf32>
    %c0_6 = arith.constant 0 : index
    %c0_7 = arith.constant 0 : index
    %8 = vector.load %arg3[%c0_6, %c0_7] : memref<64x256xf32, #tpu.memory_space<vmem>>, vector<64x256xf32>
    %9 = tpu.iota {dimensions = array<i32: 1>} : vector<1x256xi32>
    %c128_i32 = arith.constant 128 : i32
    %10 = vector.broadcast %c128_i32 : i32 to vector<1x256xi32>
    %11 = arith.cmpi sge, %9, %10 : vector<1x256xi32>
    %c192_i32 = arith.constant 192 : i32
    %12 = vector.broadcast %c192_i32 : i32 to vector<1x256xi32>
    %13 = arith.cmpi slt, %9, %12 : vector<1x256xi32>
    %14 = arith.andi %11, %13 : vector<1x256xi1>
    %cst_8 = arith.constant 1.000000e+00 : f32
    %cst_9 = arith.constant 5.000000e-01 : f32
    %15 = vector.broadcast %cst_8 : f32 to vector<1x256xf32>
    %16 = vector.broadcast %cst_9 : f32 to vector<1x256xf32>
    %17 = arith.select %14, %15, %16 : vector<1x256xi1>, vector<1x256xf32>
    %cst_10 = arith.constant 0.000000e+00 : f32
    %cst_11 = arith.constant 5.000000e-01 : f32
    %18 = vector.broadcast %cst_10 : f32 to vector<1x256xf32>
    %19 = vector.broadcast %cst_11 : f32 to vector<1x256xf32>
    %20 = arith.select %14, %18, %19 : vector<1x256xi1>, vector<1x256xf32>
    %21 = vector.shape_cast %17 : vector<1x256xf32> to vector<1x256xf32>
    %22 = vector.broadcast %21 : vector<1x256xf32> to vector<2x256xf32>
    %23 = vector.shape_cast %20 : vector<1x256xf32> to vector<1x256xf32>
    %24 = vector.broadcast %23 : vector<1x256xf32> to vector<2x256xf32>
    %cst_12 = arith.constant 0.000000e+00 : f32
    %25 = vector.broadcast %cst_12 : f32 to vector<2x64xf32>
    %cst_13 = arith.constant 0.000000e+00 : f32
    %26 = vector.broadcast %cst_13 : f32 to vector<2x64xf32>
    %27 = vector.extract_strided_slice %7 {offsets = [0, 0, 0], sizes = [2, 1, 256], strides = [1, 1, 1]} : vector<2x8x256xf32> to vector<2x1x256xf32>
    %28 = vector.shape_cast %27 : vector<2x1x256xf32> to vector<2x256xf32>
    %cst_14 = arith.constant dense<0.000000e+00> : vector<2x256xf32>
    %29 = tpu.matmul %25, %8, %cst_14 {dimension_numbers = #tpu.dot_dimension_numbers<[1], [0], [0], [1], [0, 0, 1, 1], [], []>} : vector<2x64xf32>, vector<64x256xf32>, vector<2x256xf32> -> vector<2x256xf32>
    %30 = arith.addf %28, %29 : vector<2x256xf32>
    %31 = arith.mulf %30, %22 : vector<2x256xf32>
    %32 = math.tanh %31 : vector<2x256xf32>
    %33 = arith.mulf %32, %22 : vector<2x256xf32>
    %34 = arith.addf %33, %24 : vector<2x256xf32>
    %35 = vector.extract_strided_slice %34 {offsets = [0, 0], sizes = [2, 64], strides = [1, 1]} : vector<2x256xf32> to vector<2x64xf32>
    %36 = vector.extract_strided_slice %34 {offsets = [0, 64], sizes = [2, 64], strides = [1, 1]} : vector<2x256xf32> to vector<2x64xf32>
    %37 = vector.extract_strided_slice %34 {offsets = [0, 128], sizes = [2, 64], strides = [1, 1]} : vector<2x256xf32> to vector<2x64xf32>
    %38 = vector.extract_strided_slice %34 {offsets = [0, 192], sizes = [2, 64], strides = [1, 1]} : vector<2x256xf32> to vector<2x64xf32>
    %39 = arith.mulf %36, %26 : vector<2x64xf32>
    %40 = arith.mulf %35, %37 : vector<2x64xf32>
    %41 = arith.addf %39, %40 : vector<2x64xf32>
    %42 = math.tanh %41 : vector<2x64xf32>
    %43 = arith.mulf %38, %42 : vector<2x64xf32>
    %44 = vector.extract_strided_slice %7 {offsets = [0, 1, 0], sizes = [2, 1, 256], strides = [1, 1, 1]} : vector<2x8x256xf32> to vector<2x1x256xf32>
    %45 = vector.shape_cast %44 : vector<2x1x256xf32> to vector<2x256xf32>
    %cst_15 = arith.constant dense<0.000000e+00> : vector<2x256xf32>
    %46 = tpu.matmul %43, %8, %cst_15 {dimension_numbers = #tpu.dot_dimension_numbers<[1], [0], [0], [1], [0, 0, 1, 1], [], []>} : vector<2x64xf32>, vector<64x256xf32>, vector<2x256xf32> -> vector<2x256xf32>
    %47 = arith.addf %45, %46 : vector<2x256xf32>
    %48 = arith.mulf %47, %22 : vector<2x256xf32>
    %49 = math.tanh %48 : vector<2x256xf32>
    %50 = arith.mulf %49, %22 : vector<2x256xf32>
    %51 = arith.addf %50, %24 : vector<2x256xf32>
    %52 = vector.extract_strided_slice %51 {offsets = [0, 0], sizes = [2, 64], strides = [1, 1]} : vector<2x256xf32> to vector<2x64xf32>
    %53 = vector.extract_strided_slice %51 {offsets = [0, 64], sizes = [2, 64], strides = [1, 1]} : vector<2x256xf32> to vector<2x64xf32>
    %54 = vector.extract_strided_slice %51 {offsets = [0, 128], sizes = [2, 64], strides = [1, 1]} : vector<2x256xf32> to vector<2x64xf32>
    %55 = vector.extract_strided_slice %51 {offsets = [0, 192], sizes = [2, 64], strides = [1, 1]} : vector<2x256xf32> to vector<2x64xf32>
    %56 = arith.mulf %53, %41 : vector<2x64xf32>
    %57 = arith.mulf %52, %54 : vector<2x64xf32>
    %58 = arith.addf %56, %57 : vector<2x64xf32>
    %59 = math.tanh %58 : vector<2x64xf32>
    %60 = arith.mulf %55, %59 : vector<2x64xf32>
    %61 = vector.extract_strided_slice %7 {offsets = [0, 2, 0], sizes = [2, 1, 256], strides = [1, 1, 1]} : vector<2x8x256xf32> to vector<2x1x256xf32>
    %62 = vector.shape_cast %61 : vector<2x1x256xf32> to vector<2x256xf32>
    %cst_16 = arith.constant dense<0.000000e+00> : vector<2x256xf32>
    %63 = tpu.matmul %60, %8, %cst_16 {dimension_numbers = #tpu.dot_dimension_numbers<[1], [0], [0], [1], [0, 0, 1, 1], [], []>} : vector<2x64xf32>, vector<64x256xf32>, vector<2x256xf32> -> vector<2x256xf32>
    %64 = arith.addf %62, %63 : vector<2x256xf32>
    %65 = arith.mulf %64, %22 : vector<2x256xf32>
    %66 = math.tanh %65 : vector<2x256xf32>
    %67 = arith.mulf %66, %22 : vector<2x256xf32>
    %68 = arith.addf %67, %24 : vector<2x256xf32>
    %69 = vector.extract_strided_slice %68 {offsets = [0, 0], sizes = [2, 64], strides = [1, 1]} : vector<2x256xf32> to vector<2x64xf32>
    %70 = vector.extract_strided_slice %68 {offsets = [0, 64], sizes = [2, 64], strides = [1, 1]} : vector<2x256xf32> to vector<2x64xf32>
    %71 = vector.extract_strided_slice %68 {offsets = [0, 128], sizes = [2, 64], strides = [1, 1]} : vector<2x256xf32> to vector<2x64xf32>
    %72 = vector.extract_strided_slice %68 {offsets = [0, 192], sizes = [2, 64], strides = [1, 1]} : vector<2x256xf32> to vector<2x64xf32>
    %73 = arith.mulf %70, %58 : vector<2x64xf32>
    %74 = arith.mulf %69, %71 : vector<2x64xf32>
    %75 = arith.addf %73, %74 : vector<2x64xf32>
    %76 = math.tanh %75 : vector<2x64xf32>
    %77 = arith.mulf %72, %76 : vector<2x64xf32>
    %78 = vector.extract_strided_slice %7 {offsets = [0, 3, 0], sizes = [2, 1, 256], strides = [1, 1, 1]} : vector<2x8x256xf32> to vector<2x1x256xf32>
    %79 = vector.shape_cast %78 : vector<2x1x256xf32> to vector<2x256xf32>
    %cst_17 = arith.constant dense<0.000000e+00> : vector<2x256xf32>
    %80 = tpu.matmul %77, %8, %cst_17 {dimension_numbers = #tpu.dot_dimension_numbers<[1], [0], [0], [1], [0, 0, 1, 1], [], []>} : vector<2x64xf32>, vector<64x256xf32>, vector<2x256xf32> -> vector<2x256xf32>
    %81 = arith.addf %79, %80 : vector<2x256xf32>
    %82 = arith.mulf %81, %22 : vector<2x256xf32>
    %83 = math.tanh %82 : vector<2x256xf32>
    %84 = arith.mulf %83, %22 : vector<2x256xf32>
    %85 = arith.addf %84, %24 : vector<2x256xf32>
    %86 = vector.extract_strided_slice %85 {offsets = [0, 0], sizes = [2, 64], strides = [1, 1]} : vector<2x256xf32> to vector<2x64xf32>
    %87 = vector.extract_strided_slice %85 {offsets = [0, 64], sizes = [2, 64], strides = [1, 1]} : vector<2x256xf32> to vector<2x64xf32>
    %88 = vector.extract_strided_slice %85 {offsets = [0, 128], sizes = [2, 64], strides = [1, 1]} : vector<2x256xf32> to vector<2x64xf32>
    %89 = vector.extract_strided_slice %85 {offsets = [0, 192], sizes = [2, 64], strides = [1, 1]} : vector<2x256xf32> to vector<2x64xf32>
    %90 = arith.mulf %87, %75 : vector<2x64xf32>
    %91 = arith.mulf %86, %88 : vector<2x64xf32>
    %92 = arith.addf %90, %91 : vector<2x64xf32>
    %93 = math.tanh %92 : vector<2x64xf32>
    %94 = arith.mulf %89, %93 : vector<2x64xf32>
    %95 = vector.extract_strided_slice %7 {offsets = [0, 4, 0], sizes = [2, 1, 256], strides = [1, 1, 1]} : vector<2x8x256xf32> to vector<2x1x256xf32>
    %96 = vector.shape_cast %95 : vector<2x1x256xf32> to vector<2x256xf32>
    %cst_18 = arith.constant dense<0.000000e+00> : vector<2x256xf32>
    %97 = tpu.matmul %94, %8, %cst_18 {dimension_numbers = #tpu.dot_dimension_numbers<[1], [0], [0], [1], [0, 0, 1, 1], [], []>} : vector<2x64xf32>, vector<64x256xf32>, vector<2x256xf32> -> vector<2x256xf32>
    %98 = arith.addf %96, %97 : vector<2x256xf32>
    %99 = arith.mulf %98, %22 : vector<2x256xf32>
    %100 = math.tanh %99 : vector<2x256xf32>
    %101 = arith.mulf %100, %22 : vector<2x256xf32>
    %102 = arith.addf %101, %24 : vector<2x256xf32>
    %103 = vector.extract_strided_slice %102 {offsets = [0, 0], sizes = [2, 64], strides = [1, 1]} : vector<2x256xf32> to vector<2x64xf32>
    %104 = vector.extract_strided_slice %102 {offsets = [0, 64], sizes = [2, 64], strides = [1, 1]} : vector<2x256xf32> to vector<2x64xf32>
    %105 = vector.extract_strided_slice %102 {offsets = [0, 128], sizes = [2, 64], strides = [1, 1]} : vector<2x256xf32> to vector<2x64xf32>
    %106 = vector.extract_strided_slice %102 {offsets = [0, 192], sizes = [2, 64], strides = [1, 1]} : vector<2x256xf32> to vector<2x64xf32>
    %107 = arith.mulf %104, %92 : vector<2x64xf32>
    %108 = arith.mulf %103, %105 : vector<2x64xf32>
    %109 = arith.addf %107, %108 : vector<2x64xf32>
    %110 = math.tanh %109 : vector<2x64xf32>
    %111 = arith.mulf %106, %110 : vector<2x64xf32>
    %112 = vector.extract_strided_slice %7 {offsets = [0, 5, 0], sizes = [2, 1, 256], strides = [1, 1, 1]} : vector<2x8x256xf32> to vector<2x1x256xf32>
    %113 = vector.shape_cast %112 : vector<2x1x256xf32> to vector<2x256xf32>
    %cst_19 = arith.constant dense<0.000000e+00> : vector<2x256xf32>
    %114 = tpu.matmul %111, %8, %cst_19 {dimension_numbers = #tpu.dot_dimension_numbers<[1], [0], [0], [1], [0, 0, 1, 1], [], []>} : vector<2x64xf32>, vector<64x256xf32>, vector<2x256xf32> -> vector<2x256xf32>
    %115 = arith.addf %113, %114 : vector<2x256xf32>
    %116 = arith.mulf %115, %22 : vector<2x256xf32>
    %117 = math.tanh %116 : vector<2x256xf32>
    %118 = arith.mulf %117, %22 : vector<2x256xf32>
    %119 = arith.addf %118, %24 : vector<2x256xf32>
    %120 = vector.extract_strided_slice %119 {offsets = [0, 0], sizes = [2, 64], strides = [1, 1]} : vector<2x256xf32> to vector<2x64xf32>
    %121 = vector.extract_strided_slice %119 {offsets = [0, 64], sizes = [2, 64], strides = [1, 1]} : vector<2x256xf32> to vector<2x64xf32>
    %122 = vector.extract_strided_slice %119 {offsets = [0, 128], sizes = [2, 64], strides = [1, 1]} : vector<2x256xf32> to vector<2x64xf32>
    %123 = vector.extract_strided_slice %119 {offsets = [0, 192], sizes = [2, 64], strides = [1, 1]} : vector<2x256xf32> to vector<2x64xf32>
    %124 = arith.mulf %121, %109 : vector<2x64xf32>
    %125 = arith.mulf %120, %122 : vector<2x64xf32>
    %126 = arith.addf %124, %125 : vector<2x64xf32>
    %127 = math.tanh %126 : vector<2x64xf32>
    %128 = arith.mulf %123, %127 : vector<2x64xf32>
    %129 = vector.extract_strided_slice %7 {offsets = [0, 6, 0], sizes = [2, 1, 256], strides = [1, 1, 1]} : vector<2x8x256xf32> to vector<2x1x256xf32>
    %130 = vector.shape_cast %129 : vector<2x1x256xf32> to vector<2x256xf32>
    %cst_20 = arith.constant dense<0.000000e+00> : vector<2x256xf32>
    %131 = tpu.matmul %128, %8, %cst_20 {dimension_numbers = #tpu.dot_dimension_numbers<[1], [0], [0], [1], [0, 0, 1, 1], [], []>} : vector<2x64xf32>, vector<64x256xf32>, vector<2x256xf32> -> vector<2x256xf32>
    %132 = arith.addf %130, %131 : vector<2x256xf32>
    %133 = arith.mulf %132, %22 : vector<2x256xf32>
    %134 = math.tanh %133 : vector<2x256xf32>
    %135 = arith.mulf %134, %22 : vector<2x256xf32>
    %136 = arith.addf %135, %24 : vector<2x256xf32>
    %137 = vector.extract_strided_slice %136 {offsets = [0, 0], sizes = [2, 64], strides = [1, 1]} : vector<2x256xf32> to vector<2x64xf32>
    %138 = vector.extract_strided_slice %136 {offsets = [0, 64], sizes = [2, 64], strides = [1, 1]} : vector<2x256xf32> to vector<2x64xf32>
    %139 = vector.extract_strided_slice %136 {offsets = [0, 128], sizes = [2, 64], strides = [1, 1]} : vector<2x256xf32> to vector<2x64xf32>
    %140 = vector.extract_strided_slice %136 {offsets = [0, 192], sizes = [2, 64], strides = [1, 1]} : vector<2x256xf32> to vector<2x64xf32>
    %141 = arith.mulf %138, %126 : vector<2x64xf32>
    %142 = arith.mulf %137, %139 : vector<2x64xf32>
    %143 = arith.addf %141, %142 : vector<2x64xf32>
    %144 = math.tanh %143 : vector<2x64xf32>
    %145 = arith.mulf %140, %144 : vector<2x64xf32>
    %146 = vector.extract_strided_slice %7 {offsets = [0, 7, 0], sizes = [2, 1, 256], strides = [1, 1, 1]} : vector<2x8x256xf32> to vector<2x1x256xf32>
    %147 = vector.shape_cast %146 : vector<2x1x256xf32> to vector<2x256xf32>
    %cst_21 = arith.constant dense<0.000000e+00> : vector<2x256xf32>
    %148 = tpu.matmul %145, %8, %cst_21 {dimension_numbers = #tpu.dot_dimension_numbers<[1], [0], [0], [1], [0, 0, 1, 1], [], []>} : vector<2x64xf32>, vector<64x256xf32>, vector<2x256xf32> -> vector<2x256xf32>
    %149 = arith.addf %147, %148 : vector<2x256xf32>
    %150 = arith.mulf %149, %22 : vector<2x256xf32>
    %151 = math.tanh %150 : vector<2x256xf32>
    %152 = arith.mulf %151, %22 : vector<2x256xf32>
    %153 = arith.addf %152, %24 : vector<2x256xf32>
    %154 = vector.extract_strided_slice %153 {offsets = [0, 0], sizes = [2, 64], strides = [1, 1]} : vector<2x256xf32> to vector<2x64xf32>
    %155 = vector.extract_strided_slice %153 {offsets = [0, 64], sizes = [2, 64], strides = [1, 1]} : vector<2x256xf32> to vector<2x64xf32>
    %156 = vector.extract_strided_slice %153 {offsets = [0, 128], sizes = [2, 64], strides = [1, 1]} : vector<2x256xf32> to vector<2x64xf32>
    %157 = vector.extract_strided_slice %153 {offsets = [0, 192], sizes = [2, 64], strides = [1, 1]} : vector<2x256xf32> to vector<2x64xf32>
    %158 = arith.mulf %155, %143 : vector<2x64xf32>
    %159 = arith.mulf %154, %156 : vector<2x64xf32>
    %160 = arith.addf %158, %159 : vector<2x64xf32>
    %161 = math.tanh %160 : vector<2x64xf32>
    %162 = arith.mulf %157, %161 : vector<2x64xf32>
    %163 = vector.shape_cast %43 : vector<2x64xf32> to vector<2x1x64xf32>
    %164 = vector.shape_cast %60 : vector<2x64xf32> to vector<2x1x64xf32>
    %165 = vector.shape_cast %77 : vector<2x64xf32> to vector<2x1x64xf32>
    %166 = vector.shape_cast %94 : vector<2x64xf32> to vector<2x1x64xf32>
    %167 = vector.shape_cast %111 : vector<2x64xf32> to vector<2x1x64xf32>
    %168 = vector.shape_cast %128 : vector<2x64xf32> to vector<2x1x64xf32>
    %169 = vector.shape_cast %145 : vector<2x64xf32> to vector<2x1x64xf32>
    %170 = vector.shape_cast %162 : vector<2x64xf32> to vector<2x1x64xf32>
    %171 = tpu.concatenate %163, %164, %165, %166, %167, %168, %169, %170 in 1 : vector<2x1x64xf32>, vector<2x1x64xf32>, vector<2x1x64xf32>, vector<2x1x64xf32>, vector<2x1x64xf32>, vector<2x1x64xf32>, vector<2x1x64xf32>, vector<2x1x64xf32> -> vector<2x8x64xf32>
    %c0_22 = arith.constant 0 : index
    %c0_23 = arith.constant 0 : index
    %172 = vector.load %arg5[%c0_22, %c0_23] : memref<1x64xf32, #tpu.memory_space<vmem>>, vector<1x64xf32>
    %173 = vector.shape_cast %172 : vector<1x64xf32> to vector<1x1x64xf32>
    %174 = vector.broadcast %173 : vector<1x1x64xf32> to vector<2x8x64xf32>
    %175 = arith.mulf %171, %174 : vector<2x8x64xf32>
    %cst_24 = arith.constant dense<0.000000e+00> : vector<2x8xf32>
    %176 = vector.multi_reduction <add>, %175, %cst_24 [2] : vector<2x8x64xf32> to vector<2x8xf32>
    %c0_25 = arith.constant 0 : index
    %c0_26 = arith.constant 0 : index
    %177 = vector.load %arg6[%c0_25, %c0_26] : memref<1x1xf32, #tpu.memory_space<vmem>>, vector<1x1xf32>
    %178 = vector.broadcast %177 : vector<1x1xf32> to vector<2x8xf32>
    %179 = arith.addf %176, %178 : vector<2x8xf32>
    %cst_27 = arith.constant dense<0xFF800000> : vector<2xf32>
    %180 = vector.multi_reduction <maximumf>, %179, %cst_27 [1] : vector<2x8xf32> to vector<2xf32>
    %181 = vector.shape_cast %180 : vector<2xf32> to vector<2x1xf32>
    %182 = vector.broadcast %181 : vector<2x1xf32> to vector<2x8xf32>
    %183 = arith.subf %179, %182 : vector<2x8xf32>
    %184 = math.exp %183 : vector<2x8xf32>
    %cst_28 = arith.constant dense<0.000000e+00> : vector<2xf32>
    %185 = vector.multi_reduction <add>, %184, %cst_28 [1] : vector<2x8xf32> to vector<2xf32>
    %186 = vector.shape_cast %185 : vector<2xf32> to vector<2x1xf32>
    %187 = tpu.reciprocal %186 {approx = true} : vector<2x1xf32> -> vector<2x1xf32>
    %188 = arith.mulf %186, %187 : vector<2x1xf32>
    %cst_29 = arith.constant 2.000000e+00 : f32
    %189 = vector.broadcast %cst_29 : f32 to vector<2x1xf32>
    %190 = arith.subf %189, %188 : vector<2x1xf32>
    %191 = arith.mulf %187, %190 : vector<2x1xf32>
    %192 = arith.mulf %186, %191 : vector<2x1xf32>
    %cst_30 = arith.constant 2.000000e+00 : f32
    %193 = vector.broadcast %cst_30 : f32 to vector<2x1xf32>
    %194 = arith.subf %193, %192 : vector<2x1xf32>
    %195 = arith.mulf %191, %194 : vector<2x1xf32>
    %196 = vector.broadcast %195 : vector<2x1xf32> to vector<2x8xf32>
    %197 = arith.mulf %184, %196 : vector<2x8xf32>
    %198 = vector.shape_cast %197 : vector<2x8xf32> to vector<2x8x1xf32>
    %199 = vector.broadcast %198 : vector<2x8x1xf32> to vector<2x8x64xf32>
    %200 = arith.mulf %199, %171 : vector<2x8x64xf32>
    %cst_31 = arith.constant dense<0.000000e+00> : vector<2x64xf32>
    %201 = vector.multi_reduction <add>, %200, %cst_31 [1] : vector<2x8x64xf32> to vector<2x64xf32>
    %c0_32 = arith.constant 0 : index
    %c0_33 = arith.constant 0 : index
    %202 = vector.load %arg7[%c0_32, %c0_33] : memref<1x64xf32, #tpu.memory_space<vmem>>, vector<1x64xf32>
    %203 = vector.broadcast %202 : vector<1x64xf32> to vector<2x64xf32>
    %204 = arith.mulf %201, %203 : vector<2x64xf32>
    %cst_34 = arith.constant dense<0.000000e+00> : vector<2xf32>
    %205 = vector.multi_reduction <add>, %204, %cst_34 [1] : vector<2x64xf32> to vector<2xf32>
    %206 = vector.shape_cast %205 : vector<2xf32> to vector<2x1xf32>
    %c0_35 = arith.constant 0 : index
    %c0_36 = arith.constant 0 : index
    %207 = vector.load %arg8[%c0_35, %c0_36] : memref<1x1xf32, #tpu.memory_space<vmem>>, vector<1x1xf32>
    %208 = vector.broadcast %207 : vector<1x1xf32> to vector<2x1xf32>
    %209 = arith.addf %206, %208 : vector<2x1xf32>
    %c0_37 = arith.constant 0 : index
    %c0_38 = arith.constant 0 : index
    %210 = vector.load %arg9[%c0_37, %c0_38] : memref<2x1xf32, #tpu.memory_space<vmem>>, vector<2x1xf32>
    tpu.vector_store %arg9[%c0_37, %c0_38], %209 {strides = array<i32>} : memref<2x1xf32, #tpu.memory_space<vmem>>, vector<2x1xf32>,
    return
  }
  func.func @transform_0(%arg0: i32) -> (i32, i32, i32) {
    %c0_i32 = arith.constant 0 : i32
    %c0_i32_0 = arith.constant 0 : i32
    %c0_i32_1 = arith.constant 0 : i32
    return %arg0, %c0_i32, %c0_i32_0 : i32, i32, i32
  }
  func.func @transform_1(%arg0: i32) -> (i32, i32) {
    %c0_i32 = arith.constant 0 : i32
    %c0_i32_0 = arith.constant 0 : i32
    %c0_i32_1 = arith.constant 0 : i32
    return %c0_i32, %c0_i32_0 : i32, i32
  }
  func.func @transform_2(%arg0: i32) -> (i32, i32) {
    %c0_i32 = arith.constant 0 : i32
    %c0_i32_0 = arith.constant 0 : i32
    %c0_i32_1 = arith.constant 0 : i32
    return %c0_i32, %c0_i32_0 : i32, i32
  }
  func.func @transform_3(%arg0: i32) -> (i32, i32) {
    %c0_i32 = arith.constant 0 : i32
    %c0_i32_0 = arith.constant 0 : i32
    %c0_i32_1 = arith.constant 0 : i32
    return %c0_i32, %c0_i32_0 : i32, i32
  }
  func.func @transform_4(%arg0: i32) -> (i32, i32) {
    %c0_i32 = arith.constant 0 : i32
    %c0_i32_0 = arith.constant 0 : i32
    %c0_i32_1 = arith.constant 0 : i32
    return %c0_i32, %c0_i32_0 : i32, i32
  }
  func.func @transform_5(%arg0: i32) -> (i32, i32) {
    %c0_i32 = arith.constant 0 : i32
    %c0_i32_0 = arith.constant 0 : i32
    %c0_i32_1 = arith.constant 0 : i32
    return %c0_i32, %c0_i32_0 : i32, i32
  }
  func.func @transform_6(%arg0: i32) -> (i32, i32) {
    %c0_i32 = arith.constant 0 : i32
    %c0_i32_0 = arith.constant 0 : i32
    %c0_i32_1 = arith.constant 0 : i32
    return %c0_i32, %c0_i32_0 : i32, i32
  }
  func.func @transform_7(%arg0: i32) -> (i32, i32) {
    %c0_i32 = arith.constant 0 : i32
    %c0_i32_0 = arith.constant 0 : i32
    %c0_i32_1 = arith.constant 0 : i32
    return %c0_i32, %c0_i32_0 : i32, i32
  }
  func.func @transform_8(%arg0: i32) -> (i32, i32) {
    %c0_i32 = arith.constant 0 : i32
    %c0_i32_0 = arith.constant 0 : i32
    return %arg0, %c0_i32 : i32, i32
  }
}

</mosaic_0001>

<llo_original>
// kernel: tpu_custom_call.1
$region0: #{tpu_custom_call.1}
  #allocation0 [shape = 'u32[]', space=smem, size = 0x4, offset = 0x4, fixed_abs, tag = 'smem constant byte address 0x4 - core index']
  #allocation1 [shape = 'u32[144,128]{1,0:T(1,128)}', space=vmem, size = 0x12000, scoped, tag = 'internal scratch']
  #allocation2 [shape = 'f32[1,1]{1,0:T(1,128)S(1)}', space=vmem, size = 0x200, scoped, tag = 'scoped memory for tpu_custom_call.1']
  #allocation3 [shape = 'f32[1,1]{1,0:T(1,128)S(1)}', space=vmem, size = 0x200, scoped, tag = 'scoped memory for tpu_custom_call.1']
  %s0 = inlined_call_operand.vmem [shape: f32[2,8,6], index: 0, kind: input, shape index: {}]
  %s1 = inlined_call_operand.vmem [shape: f32[6,256], index: 1, kind: input, shape index: {}]
  %s2 = inlined_call_operand.hbm [shape: f32[64,256], index: 2, kind: input, shape index: {}]
  %s3 = inlined_call_operand.vmem [shape: f32[1,256], index: 3, kind: input, shape index: {}]
  %s4 = inlined_call_operand.vmem [shape: f32[1,64], index: 4, kind: input, shape index: {}]
  %s5 = inlined_call_operand.<no memory space> [shape: f32[1,1], index: 5, kind: input, shape index: {}]
  %s6 = inlined_call_operand.vmem [shape: f32[1,64], index: 6, kind: input, shape index: {}]
  %s7 = inlined_call_operand.<no memory space> [shape: f32[1,1], index: 7, kind: input, shape index: {}]
  %s8 = inlined_call_operand.vmem [shape: f32[2,1], index: 8, kind: output, shape index: {}]
  %s9 = sld [smem:[#allocation0]]
  $region46: #{tpu_custom_call.1} parent=0
    _
  %s11 = ssub.s32 1, %s9
  %s12 = scalar_select 0, %s11, %s9
  %v13 = vstv %s5
  %14 = vst [vmem:[#allocation2] sm:$0x1] %v13
  %v15 = vstv %s7
  %16 = vst [vmem:[#allocation3] sm:$0x1] %v15
  $region1: #{tpu_custom_call.1} parent=0
    #allocation4 [shape = 'u8[65536]{0}', space=vmem, size = 0x10000, scoped, tag = 'input window, operand 2, single buffered']
    #allocation5 [shape = 's32[1]{0}', space=sflag, size = 0x4, scoped, tag = 'scoped memory for tpu_custom_call.1']
    %17 = vsyncpa [#allocation5], 0
    // Predicated region
    $region2: #{tpu_custom_call.1} parent=1 // pred_check
      _
    $region3: #{tpu_custom_call.1} parent=1 // pred_check_branch
      %19 = sbr.rel (0) target = $region5
    $region4: #{tpu_custom_call.1} parent=1 // pred_region
      _
    $region5: #{tpu_custom_call.1} parent=1 // pred_fallthru
      _
    // Predicated region
    $region6: #{tpu_custom_call.1} parent=1 // pred_check
      _
    $region7: #{tpu_custom_call.1} parent=1 // pred_check_branch
      %21 = sbr.rel (0) target = $region9
    $region8: #{tpu_custom_call.1} parent=1 // pred_region
      _
    $region9: #{tpu_custom_call.1} parent=1 // pred_fallthru
      _
    // Predicated region
    $region10: #{tpu_custom_call.1} parent=1 // pred_check
      _
    $region11: #{tpu_custom_call.1} parent=1 // pred_check_branch
      %23 = sbr.rel (0) target = $region13
    $region12: #{tpu_custom_call.1} parent=1 // pred_region
      %s25 = ssub.s32 2048, 2048
      %26 = vsyncadd [#allocation5], %s25
      %s27 = sshll.u32 [#allocation4], 4
      %s28 = int_to_ptr.vmem [resolvable:$true] %s27
      %33 = dma.hbm_to_vmem [thread:$0]  %s2, 2048, %s28, [#allocation5], 256, 256, 16
    $region13: #{tpu_custom_call.1} parent=1 // pred_fallthru
      _
    // Predicated region
    $region14: #{tpu_custom_call.1} parent=1 // pred_check
      _
    $region15: #{tpu_custom_call.1} parent=1 // pred_check_branch
      %35 = sbr.rel (0) target = $region17
    $region16: #{tpu_custom_call.1} parent=1 // pred_region
      _
    $region17: #{tpu_custom_call.1} parent=1 // pred_fallthru
      _
    // Predicated region
    $region18: #{tpu_custom_call.1} parent=1 // pred_check
      _
    $region19: #{tpu_custom_call.1} parent=1 // pred_check_branch
      %37 = sbr.rel (0) target = $region21
    $region20: #{tpu_custom_call.1} parent=1 // pred_region
      _
    $region21: #{tpu_custom_call.1} parent=1 // pred_fallthru
      _
    // Predicated region
    $region22: #{tpu_custom_call.1} parent=1 // pred_check
      _
    $region23: #{tpu_custom_call.1} parent=1 // pred_check_branch
      %39 = sbr.rel (0) target = $region25
    $region24: #{tpu_custom_call.1} parent=1 // pred_region
      _
    $region25: #{tpu_custom_call.1} parent=1 // pred_fallthru
      _
    // Predicated region
    $region26: #{tpu_custom_call.1} parent=1 // pred_check
      _
    $region27: #{tpu_custom_call.1} parent=1 // pred_check_branch
      %41 = sbr.rel (0) target = $region29
    $region28: #{tpu_custom_call.1} parent=1 // pred_region
      _
    $region29: #{tpu_custom_call.1} parent=1 // pred_fallthru
      _
    // Predicated region
    $region30: #{tpu_custom_call.1} parent=1 // pred_check
      _
    $region31: #{tpu_custom_call.1} parent=1 // pred_check_branch
      %43 = sbr.rel (0) target = $region33
    $region32: #{tpu_custom_call.1} parent=1 // pred_region
      _
    $region33: #{tpu_custom_call.1} parent=1 // pred_fallthru
      _
    // Predicated region
    $region34: #{tpu_custom_call.1} parent=1 // pred_check
      _
    $region35: #{tpu_custom_call.1} parent=1 // pred_check_branch
      %45 = sbr.rel (0) target = $region37
    $region36: #{tpu_custom_call.1} parent=1 // pred_region
      %46 = dma.done [#allocation5], 2048
    $region37: #{tpu_custom_call.1} parent=1 // pred_fallthru
      _
    %v47 = vld [vmem:[%s0] sm:$0xff]
    %v48 = vld [vmem:[%s0 + $0x8] sm:$0xff]
    %v49 = vld [vmem:[%s1] sm:$0x3f]
    %v50 = vld [vmem:[%s1 + $0x8] sm:$0x3f]
    %v51 = vld [vmem:[%s3] sm:$0x3]
    %v53 = vlaneseq
    %v54 = vshrl.u32 %v53, 7
    %v55 = vsub.s32 0, %v54
    %v56 = vrot.slane %v51, %v55
    %v57 = vlaneseq
    %v58 = vshrl.u32 %v57, 7
    %v59 = vsub.s32 1, %v58
    %v60 = vrot.slane %v51, %v59
    %vm63 = vcmask 48128
    %v65 = vsel %vm63, %v47, 0
    %v68 = vsel %vm63, %v48, 0
    %vm70 = vcmask 1045504
    %v72 = vsel %vm70, %v49, 0
    %v75 = vsel %vm70, %v50, 0
    %77 = vmatprep.subr.mxu0 0.0
    %78 = vmatpush1.msra.mxu0 0.0
    %79 = vmatprep.subr.mxu0 0.0
    %80 = vmatpush1.msra.mxu0 0.0
    %81 = vmatprep.subr.mxu0 0.0
    %82 = vmatpush1.msra.mxu0 0.0
    %83 = vmatprep.subr.mxu0 0.0
    %84 = vmatpush1.msra.mxu0 0.0
    %85 = vmatprep.subr.mxu0 0.0
    %86 = vmatpush1.msra.mxu0 0.0
    %87 = vmatprep.subr.mxu0 0.0
    %88 = vmatpush1.msra.mxu0 0.0
    %89 = vmatprep.subr.mxu0 0.0
    %90 = vmatpush1.msra.mxu0 0.0
    %91 = vmatprep.subr.mxu0 0.0
    %92 = vmatpush1.msra.mxu0 0.0
    %93 = vmatprep.subr.mxu0 0.0
    %94 = vmatpush1.msra.mxu0 0.0
    %95 = vmatprep.subr.mxu0 0.0
    %96 = vmatpush1.msra.mxu0 0.0
    %97 = vmatprep.subr.mxu0 0.0
    %98 = vmatpush1.msra.mxu0 0.0
    %99 = vmatprep.subr.mxu0 0.0
    %100 = vmatpush1.msra.mxu0 0.0
    %101 = vmatprep.subr.mxu0 0.0
    %102 = vmatpush1.msra.mxu0 0.0
    %103 = vmatprep.subr.mxu0 0.0
    %104 = vmatpush1.msra.mxu0 0.0
    %105 = vmatprep.subr.mxu0 0.0
    %106 = vmatpush1.msra.mxu0 0.0
    %107 = vmatprep.subr.mxu0 %v75
    %108 = vmatpush1.msra.mxu0 %v72
    %109 = vmatprep.subr.mxu0 0.0
    %110 = vmatpush2.msra.mxu0 0.0
    %111 = vmatprep.subr.mxu0 0.0
    %112 = vmatpush2.msra.mxu0 0.0
    %113 = vmatprep.subr.mxu0 0.0
    %114 = vmatpush2.msra.mxu0 0.0
    %115 = vmatprep.subr.mxu0 0.0
    %116 = vmatpush2.msra.mxu0 0.0
    %117 = vmatprep.subr.mxu0 0.0
    %118 = vmatpush2.msra.mxu0 0.0
    %119 = vmatprep.subr.mxu0 0.0
    %120 = vmatpush2.msra.mxu0 0.0
    %121 = vmatprep.subr.mxu0 0.0
    %122 = vmatpush2.msra.mxu0 0.0
    %123 = vmatprep.subr.mxu0 0.0
    %124 = vmatpush2.msra.mxu0 0.0
    %125 = vmatprep.subr.mxu0 0.0
    %126 = vmatpush2.msra.mxu0 0.0
    %127 = vmatprep.subr.mxu0 0.0
    %128 = vmatpush2.msra.mxu0 0.0
    %129 = vmatprep.subr.mxu0 0.0
    %130 = vmatpush2.msra.mxu0 0.0
    %131 = vmatprep.subr.mxu0 0.0
    %132 = vmatpush2.msra.mxu0 0.0
    %133 = vmatprep.subr.mxu0 0.0
    %134 = vmatpush2.msra.mxu0 0.0
    %135 = vmatprep.subr.mxu0 0.0
    %136 = vmatpush2.msra.mxu0 0.0
    %137 = vmatprep.subr.mxu0 0.0
    %138 = vmatpush2.msra.mxu0 0.0
    %139 = vmatprep.subr.mxu0 0.0
    %140 = vmatpush2.msra.mxu0 0.0
    %141 = vmatprep.mubr.f32.mxu0 0.0
    %142 = vmatmul.mubr.f32.gmra.mxu0 %v65
    %v143 = vpop.f32.mrf.mxu0
    %v144 = vadd.f32 %v56, %v143
    %v145 = vpop.f32.mrf.mxu0
    %v146 = vadd.f32 %v60, %v145
    %147 = vmatprep.mubr.f32.mxu0 0.0
    %148 = vmatmul.mubr.f32.gmra.mxu0 %v68
    %v149 = vpop.f32.mrf.mxu0
    %v150 = vadd.f32 %v56, %v149
    %v151 = vpop.f32.mrf.mxu0
    %v152 = vadd.f32 %v60, %v151
    %153 = vdwg.mxu0
    %v154 = vld [vmem:[#allocation4] sm:$0xff]
    %v155 = vld [vmem:[#allocation4 + $0x8] sm:$0xff]
    %v156 = vld [vmem:[#allocation4 + $0x10] sm:$0xff]
    %v157 = vld [vmem:[#allocation4 + $0x18] sm:$0xff]
    %v158 = vld [vmem:[#allocation4 + $0x20] sm:$0xff]
    %v159 = vld [vmem:[#allocation4 + $0x28] sm:$0xff]
    %v160 = vld [vmem:[#allocation4 + $0x30] sm:$0xff]
    %v161 = vld [vmem:[#allocation4 + $0x38] sm:$0xff]
    %v162 = vld [vmem:[#allocation4 + $0x40] sm:$0xff]
    %v163 = vld [vmem:[#allocation4 + $0x48] sm:$0xff]
    %v164 = vld [vmem:[#allocation4 + $0x50] sm:$0xff]
    %v165 = vld [vmem:[#allocation4 + $0x58] sm:$0xff]
    %v166 = vld [vmem:[#allocation4 + $0x60] sm:$0xff]
    %v167 = vld [vmem:[#allocation4 + $0x68] sm:$0xff]
    %v168 = vld [vmem:[#allocation4 + $0x70] sm:$0xff]
    %v169 = vld [vmem:[#allocation4 + $0x78] sm:$0xff]
    %v170 = vlaneseq
    %v171 = vand.u32 %v170, 127
    %v172 = vadd.s32 %v171, 128
    %vm173 = vcmp.ge.s32.totalorder %v171, 128
    %vm174 = vcmp.ge.s32.totalorder %v172, 128
    %vm175 = vcmp.lt.s32.totalorder %v171, 192
    %vm176 = vcmp.lt.s32.totalorder %v172, 192
    %vm177 = vmand %vm173, %vm175
    %vm178 = vmand %vm174, %vm176
    %v179 = vsel %vm177, 1.0, 0.5
    %v180 = vsel %vm178, 1.0, 0.5
    %v181 = vsel %vm177, 0.0, 0.5
    %v182 = vsel %vm178, 0.0, 0.5
    %vm183 = vcmask 523264
    %v185 = vsel %vm183, 0.0, 0
    %187 = vmatprep.subr.mxu0 0.0
    %188 = vmatpush1.msra.mxu0 0.0
    %189 = vmatprep.subr.mxu0 0.0
    %190 = vmatpush1.msra.mxu0 0.0
    %191 = vmatprep.subr.mxu0 0.0
    %192 = vmatpush1.msra.mxu0 0.0
    %193 = vmatprep.subr.mxu0 0.0
    %194 = vmatpush1.msra.mxu0 0.0
    %195 = vmatprep.subr.mxu0 0.0
    %196 = vmatpush1.msra.mxu0 0.0
    %197 = vmatprep.subr.mxu0 0.0
    %198 = vmatpush1.msra.mxu0 0.0
    %199 = vmatprep.subr.mxu0 0.0
    %200 = vmatpush1.msra.mxu0 0.0
    %201 = vmatprep.subr.mxu0 0.0
    %202 = vmatpush1.msra.mxu0 0.0
    %203 = vmatprep.subr.mxu0 %v169
    %204 = vmatpush1.msra.mxu0 %v168
    %205 = vmatprep.subr.mxu0 %v167
    %206 = vmatpush1.msra.mxu0 %v166
    %207 = vmatprep.subr.mxu0 %v165
    %208 = vmatpush1.msra.mxu0 %v164
    %209 = vmatprep.subr.mxu0 %v163
    %210 = vmatpush1.msra.mxu0 %v162
    %211 = vmatprep.subr.mxu0 %v161
    %212 = vmatpush1.msra.mxu0 %v160
    %213 = vmatprep.subr.mxu0 %v159
    %214 = vmatpush1.msra.mxu0 %v158
    %215 = vmatprep.subr.mxu0 %v157
    %216 = vmatpush1.msra.mxu0 %v156
    %217 = vmatprep.subr.mxu0 %v155
    %218 = vmatpush1.msra.mxu0 %v154
    %219 = vmatprep.subr.mxu0 0.0
    %220 = vmatpush2.msra.mxu0 0.0
    %221 = vmatprep.subr.mxu0 0.0
    %222 = vmatpush2.msra.mxu0 0.0
    %223 = vmatprep.subr.mxu0 0.0
    %224 = vmatpush2.msra.mxu0 0.0
    %225 = vmatprep.subr.mxu0 0.0
    %226 = vmatpush2.msra.mxu0 0.0
    %227 = vmatprep.subr.mxu0 0.0
    %228 = vmatpush2.msra.mxu0 0.0
    %229 = vmatprep.subr.mxu0 0.0
    %230 = vmatpush2.msra.mxu0 0.0
    %231 = vmatprep.subr.mxu0 0.0
    %232 = vmatpush2.msra.mxu0 0.0
    %233 = vmatprep.subr.mxu0 0.0
    %234 = vmatpush2.msra.mxu0 0.0
    %235 = vmatprep.subr.mxu0 0.0
    %236 = vmatpush2.msra.mxu0 0.0
    %237 = vmatprep.subr.mxu0 0.0
    %238 = vmatpush2.msra.mxu0 0.0
    %239 = vmatprep.subr.mxu0 0.0
    %240 = vmatpush2.msra.mxu0 0.0
    %241 = vmatprep.subr.mxu0 0.0
    %242 = vmatpush2.msra.mxu0 0.0
    %243 = vmatprep.subr.mxu0 0.0
    %244 = vmatpush2.msra.mxu0 0.0
    %245 = vmatprep.subr.mxu0 0.0
    %246 = vmatpush2.msra.mxu0 0.0
    %247 = vmatprep.subr.mxu0 0.0
    %248 = vmatpush2.msra.mxu0 0.0
    %249 = vmatprep.subr.mxu0 0.0
    %250 = vmatpush2.msra.mxu0 0.0
    %251 = vmatprep.mubr.f32.mxu0 0.0
    %252 = vmatmul.mubr.f32.gmra.mxu0 %v185
    %v253 = vpop.f32.mrf.mxu0
    %v254 = vadd.f32 0.0, %v253
    %v255 = vpop.f32.mrf.mxu0
    %v256 = vadd.f32 0.0, %v255
    %257 = vdwg.mxu0
    %v260 = vrot.slane %v254, 1
    %v261 = vrot.slane %v256, 1
    %v266 = vadd.f32 %v144, %v254
    %v267 = vadd.f32 %v146, %v256
    %v268 = vadd.f32 %v150, %v260
    %v269 = vadd.f32 %v152, %v261
    %v270 = vmul.f32 %v266, %v179
    %v271 = vmul.f32 %v267, %v180
    %v272 = vmul.f32 %v268, %v179
    %v273 = vmul.f32 %v269, %v180
    %v274 = vtanh.pop %v270
    %v275 = vtanh.pop %v271
    %v276 = vtanh.pop %v272
    %v277 = vtanh.pop %v273
    %v278 = vmul.f32 %v274, %v179
    %v279 = vmul.f32 %v275, %v180
    %v280 = vmul.f32 %v276, %v179
    %v281 = vmul.f32 %v277, %v180
    %v282 = vadd.f32 %v278, %v181
    %v283 = vadd.f32 %v279, %v182
    %v284 = vadd.f32 %v280, %v181
    %v285 = vadd.f32 %v281, %v182
    %v286 = vmul.f32 %v282, 0.0
    %v287 = vmul.f32 %v284, 0.0
    %v288 = vmul.f32 %v282, %v283
    %v289 = vmul.f32 %v284, %v285
    %292 = vrot.lane.b32.xlu0 %v288, 64
    %v293 = vpop.permute.xlu0 %292
    %294 = vrot.lane.b32.xlu0 %v289, 64
    %v295 = vpop.permute.xlu0 %294
    %v298 = vadd.f32 %v286, %v293
    %v299 = vadd.f32 %v287, %v295
    %v300 = vtanh.pop %v298
    %v301 = vtanh.pop %v299
    %v302 = vmul.f32 %v283, %v300
    %v303 = vmul.f32 %v285, %v301
    %v306 = vrot.slane %v303, 7
    %vm307 = vcmask 1041409
    %v308 = vsel %vm307, %v306, %v302
    %309 = vrot.lane.b32.xlu0 %v308, 64
    %v310 = vpop.permute.xlu0 %309
    %v311 = vsel %vm183, %v310, 0
    %313 = vmatprep.subr.mxu0 0.0
    %314 = vmatpush1.msra.mxu0 0.0
    %315 = vmatprep.subr.mxu0 0.0
    %316 = vmatpush1.msra.mxu0 0.0
    %317 = vmatprep.subr.mxu0 0.0
    %318 = vmatpush1.msra.mxu0 0.0
    %319 = vmatprep.subr.mxu0 0.0
    %320 = vmatpush1.msra.mxu0 0.0
    %321 = vmatprep.subr.mxu0 0.0
    %322 = vmatpush1.msra.mxu0 0.0
    %323 = vmatprep.subr.mxu0 0.0
    %324 = vmatpush1.msra.mxu0 0.0
    %325 = vmatprep.subr.mxu0 0.0
    %326 = vmatpush1.msra.mxu0 0.0
    %327 = vmatprep.subr.mxu0 0.0
    %328 = vmatpush1.msra.mxu0 0.0
    %329 = vmatprep.subr.mxu0 %v169
    %330 = vmatpush1.msra.mxu0 %v168
    %331 = vmatprep.subr.mxu0 %v167
    %332 = vmatpush1.msra.mxu0 %v166
    %333 = vmatprep.subr.mxu0 %v165
    %334 = vmatpush1.msra.mxu0 %v164
    %335 = vmatprep.subr.mxu0 %v163
    %336 = vmatpush1.msra.mxu0 %v162
    %337 = vmatprep.subr.mxu0 %v161
    %338 = vmatpush1.msra.mxu0 %v160
    %339 = vmatprep.subr.mxu0 %v159
    %340 = vmatpush1.msra.mxu0 %v158
    %341 = vmatprep.subr.mxu0 %v157
    %342 = vmatpush1.msra.mxu0 %v156
    %343 = vmatprep.subr.mxu0 %v155
    %344 = vmatpush1.msra.mxu0 %v154
    %345 = vmatprep.subr.mxu0 0.0
    %346 = vmatpush2.msra.mxu0 0.0
    %347 = vmatprep.subr.mxu0 0.0
    %348 = vmatpush2.msra.mxu0 0.0
    %349 = vmatprep.subr.mxu0 0.0
    %350 = vmatpush2.msra.mxu0 0.0
    %351 = vmatprep.subr.mxu0 0.0
    %352 = vmatpush2.msra.mxu0 0.0
    %353 = vmatprep.subr.mxu0 0.0
    %354 = vmatpush2.msra.mxu0 0.0
    %355 = vmatprep.subr.mxu0 0.0
    %356 = vmatpush2.msra.mxu0 0.0
    %357 = vmatprep.subr.mxu0 0.0
    %358 = vmatpush2.msra.mxu0 0.0
    %359 = vmatprep.subr.mxu0 0.0
    %360 = vmatpush2.msra.mxu0 0.0
    %361 = vmatprep.subr.mxu0 0.0
    %362 = vmatpush2.msra.mxu0 0.0
    %363 = vmatprep.subr.mxu0 0.0
    %364 = vmatpush2.msra.mxu0 0.0
    %365 = vmatprep.subr.mxu0 0.0
    %366 = vmatpush2.msra.mxu0 0.0
    %367 = vmatprep.subr.mxu0 0.0
    %368 = vmatpush2.msra.mxu0 0.0
    %369 = vmatprep.subr.mxu0 0.0
    %370 = vmatpush2.msra.mxu0 0.0
    %371 = vmatprep.subr.mxu0 0.0
    %372 = vmatpush2.msra.mxu0 0.0
    %373 = vmatprep.subr.mxu0 0.0
    %374 = vmatpush2.msra.mxu0 0.0
    %375 = vmatprep.subr.mxu0 0.0
    %376 = vmatpush2.msra.mxu0 0.0
    %377 = vmatprep.mubr.f32.mxu0 0.0
    %378 = vmatmul.mubr.f32.gmra.mxu0 %v311
    %v379 = vpop.f32.mrf.mxu0
    %v380 = vadd.f32 0.0, %v379
    %v381 = vpop.f32.mrf.mxu0
    %v382 = vadd.f32 0.0, %v381
    %383 = vdwg.mxu0
    %v386 = vrot.slane %v380, 7
    %v387 = vrot.slane %v382, 7
    %v392 = vadd.f32 %v144, %v386
    %v393 = vadd.f32 %v146, %v387
    %v394 = vadd.f32 %v150, %v380
    %v395 = vadd.f32 %v152, %v382
    %v396 = vmul.f32 %v392, %v179
    %v397 = vmul.f32 %v393, %v180
    %v398 = vmul.f32 %v394, %v179
    %v399 = vmul.f32 %v395, %v180
    %v400 = vtanh.pop %v396
    %v401 = vtanh.pop %v397
    %v402 = vtanh.pop %v398
    %v403 = vtanh.pop %v399
    %v404 = vmul.f32 %v400, %v179
    %v405 = vmul.f32 %v401, %v180
    %v406 = vmul.f32 %v402, %v179
    %v407 = vmul.f32 %v403, %v180
    %v408 = vadd.f32 %v404, %v181
    %v409 = vadd.f32 %v405, %v182
    %v410 = vadd.f32 %v406, %v181
    %v411 = vadd.f32 %v407, %v182
    %v414 = vrot.slane %v298, 7
    %v415 = vrot.slane %v299, 7
    %v418 = vmul.f32 %v408, %v414
    %v419 = vmul.f32 %v410, %v415
    %v420 = vmul.f32 %v408, %v409
    %v421 = vmul.f32 %v410, %v411
    %424 = vrot.lane.b32.xlu0 %v420, 64
    %v425 = vpop.permute.xlu0 %424
    %426 = vrot.lane.b32.xlu0 %v421, 64
    %v427 = vpop.permute.xlu0 %426
    %v430 = vadd.f32 %v418, %v425
    %v431 = vadd.f32 %v419, %v427
    %v432 = vtanh.pop %v430
    %v433 = vtanh.pop %v431
    %v434 = vmul.f32 %v409, %v432
    %v435 = vmul.f32 %v411, %v433
    %v438 = vrot.slane %v434, 1
    %v439 = vsel %vm307, %v435, %v438
    %440 = vrot.lane.b32.xlu0 %v439, 64
    %v441 = vpop.permute.xlu0 %440
    %v442 = vsel %vm183, %v441, 0
    %444 = vmatprep.subr.mxu0 0.0
    %445 = vmatpush1.msra.mxu0 0.0
    %446 = vmatprep.subr.mxu0 0.0
    %447 = vmatpush1.msra.mxu0 0.0
    %448 = vmatprep.subr.mxu0 0.0
    %449 = vmatpush1.msra.mxu0 0.0
    %450 = vmatprep.subr.mxu0 0.0
    %451 = vmatpush1.msra.mxu0 0.0
    %452 = vmatprep.subr.mxu0 0.0
    %453 = vmatpush1.msra.mxu0 0.0
    %454 = vmatprep.subr.mxu0 0.0
    %455 = vmatpush1.msra.mxu0 0.0
    %456 = vmatprep.subr.mxu0 0.0
    %457 = vmatpush1.msra.mxu0 0.0
    %458 = vmatprep.subr.mxu0 0.0
    %459 = vmatpush1.msra.mxu0 0.0
    %460 = vmatprep.subr.mxu0 %v169
    %461 = vmatpush1.msra.mxu0 %v168
    %462 = vmatprep.subr.mxu0 %v167
    %463 = vmatpush1.msra.mxu0 %v166
    %464 = vmatprep.subr.mxu0 %v165
    %465 = vmatpush1.msra.mxu0 %v164
    %466 = vmatprep.subr.mxu0 %v163
    %467 = vmatpush1.msra.mxu0 %v162
    %468 = vmatprep.subr.mxu0 %v161
    %469 = vmatpush1.msra.mxu0 %v160
    %470 = vmatprep.subr.mxu0 %v159
    %471 = vmatpush1.msra.mxu0 %v158
    %472 = vmatprep.subr.mxu0 %v157
    %473 = vmatpush1.msra.mxu0 %v156
    %474 = vmatprep.subr.mxu0 %v155
    %475 = vmatpush1.msra.mxu0 %v154
    %476 = vmatprep.subr.mxu0 0.0
    %477 = vmatpush2.msra.mxu0 0.0
    %478 = vmatprep.subr.mxu0 0.0
    %479 = vmatpush2.msra.mxu0 0.0
    %480 = vmatprep.subr.mxu0 0.0
    %481 = vmatpush2.msra.mxu0 0.0
    %482 = vmatprep.subr.mxu0 0.0
    %483 = vmatpush2.msra.mxu0 0.0
    %484 = vmatprep.subr.mxu0 0.0
    %485 = vmatpush2.msra.mxu0 0.0
    %486 = vmatprep.subr.mxu0 0.0
    %487 = vmatpush2.msra.mxu0 0.0
    %488 = vmatprep.subr.mxu0 0.0
    %489 = vmatpush2.msra.mxu0 0.0
    %490 = vmatprep.subr.mxu0 0.0
    %491 = vmatpush2.msra.mxu0 0.0
    %492 = vmatprep.subr.mxu0 0.0
    %493 = vmatpush2.msra.mxu0 0.0
    %494 = vmatprep.subr.mxu0 0.0
    %495 = vmatpush2.msra.mxu0 0.0
    %496 = vmatprep.subr.mxu0 0.0
    %497 = vmatpush2.msra.mxu0 0.0
    %498 = vmatprep.subr.mxu0 0.0
    %499 = vmatpush2.msra.mxu0 0.0
    %500 = vmatprep.subr.mxu0 0.0
    %501 = vmatpush2.msra.mxu0 0.0
    %502 = vmatprep.subr.mxu0 0.0
    %503 = vmatpush2.msra.mxu0 0.0
    %504 = vmatprep.subr.mxu0 0.0
    %505 = vmatpush2.msra.mxu0 0.0
    %506 = vmatprep.subr.mxu0 0.0
    %507 = vmatpush2.msra.mxu0 0.0
    %508 = vmatprep.mubr.f32.mxu0 0.0
    %509 = vmatmul.mubr.f32.gmra.mxu0 %v442
    %v510 = vpop.f32.mrf.mxu0
    %v511 = vadd.f32 0.0, %v510
    %v512 = vpop.f32.mrf.mxu0
    %v513 = vadd.f32 0.0, %v512
    %514 = vdwg.mxu0
    %v517 = vrot.slane %v511, 6
    %v518 = vrot.slane %v513, 6
    %v519 = vrot.slane %v511, 7
    %v520 = vrot.slane %v513, 7
    %v525 = vadd.f32 %v144, %v517
    %v526 = vadd.f32 %v146, %v518
    %v527 = vadd.f32 %v150, %v519
    %v528 = vadd.f32 %v152, %v520
    %v529 = vmul.f32 %v525, %v179
    %v530 = vmul.f32 %v526, %v180
    %v531 = vmul.f32 %v527, %v179
    %v532 = vmul.f32 %v528, %v180
    %v533 = vtanh.pop %v529
    %v534 = vtanh.pop %v530
    %v535 = vtanh.pop %v531
    %v536 = vtanh.pop %v532
    %v537 = vmul.f32 %v533, %v179
    %v538 = vmul.f32 %v534, %v180
    %v539 = vmul.f32 %v535, %v179
    %v540 = vmul.f32 %v536, %v180
    %v541 = vadd.f32 %v537, %v181
    %v542 = vadd.f32 %v538, %v182
    %v543 = vadd.f32 %v539, %v181
    %v544 = vadd.f32 %v540, %v182
    %v547 = vrot.slane %v430, 7
    %v548 = vrot.slane %v431, 7
    %v551 = vmul.f32 %v541, %v547
    %v552 = vmul.f32 %v543, %v548
    %v553 = vmul.f32 %v541, %v542
    %v554 = vmul.f32 %v543, %v544
    %557 = vrot.lane.b32.xlu0 %v553, 64
    %v558 = vpop.permute.xlu0 %557
    %559 = vrot.lane.b32.xlu0 %v554, 64
    %v560 = vpop.permute.xlu0 %559
    %v563 = vadd.f32 %v551, %v558
    %v564 = vadd.f32 %v552, %v560
    %v565 = vtanh.pop %v563
    %v566 = vtanh.pop %v564
    %v567 = vmul.f32 %v542, %v565
    %v568 = vmul.f32 %v544, %v566
    %v571 = vrot.slane %v567, 2
    %v572 = vrot.slane %v568, 1
    %v573 = vsel %vm307, %v572, %v571
    %574 = vrot.lane.b32.xlu0 %v573, 64
    %v575 = vpop.permute.xlu0 %574
    %v576 = vsel %vm183, %v575, 0
    %578 = vmatprep.subr.mxu0 0.0
    %579 = vmatpush1.msra.mxu0 0.0
    %580 = vmatprep.subr.mxu0 0.0
    %581 = vmatpush1.msra.mxu0 0.0
    %582 = vmatprep.subr.mxu0 0.0
    %583 = vmatpush1.msra.mxu0 0.0
    %584 = vmatprep.subr.mxu0 0.0
    %585 = vmatpush1.msra.mxu0 0.0
    %586 = vmatprep.subr.mxu0 0.0
    %587 = vmatpush1.msra.mxu0 0.0
    %588 = vmatprep.subr.mxu0 0.0
    %589 = vmatpush1.msra.mxu0 0.0
    %590 = vmatprep.subr.mxu0 0.0
    %591 = vmatpush1.msra.mxu0 0.0
    %592 = vmatprep.subr.mxu0 0.0
    %593 = vmatpush1.msra.mxu0 0.0
    %594 = vmatprep.subr.mxu0 %v169
    %595 = vmatpush1.msra.mxu0 %v168
    %596 = vmatprep.subr.mxu0 %v167
    %597 = vmatpush1.msra.mxu0 %v166
    %598 = vmatprep.subr.mxu0 %v165
    %599 = vmatpush1.msra.mxu0 %v164
    %600 = vmatprep.subr.mxu0 %v163
    %601 = vmatpush1.msra.mxu0 %v162
    %602 = vmatprep.subr.mxu0 %v161
    %603 = vmatpush1.msra.mxu0 %v160
    %604 = vmatprep.subr.mxu0 %v159
    %605 = vmatpush1.msra.mxu0 %v158
    %606 = vmatprep.subr.mxu0 %v157
    %607 = vmatpush1.msra.mxu0 %v156
    %608 = vmatprep.subr.mxu0 %v155
    %609 = vmatpush1.msra.mxu0 %v154
    %610 = vmatprep.subr.mxu0 0.0
    %611 = vmatpush2.msra.mxu0 0.0
    %612 = vmatprep.subr.mxu0 0.0
    %613 = vmatpush2.msra.mxu0 0.0
    %614 = vmatprep.subr.mxu0 0.0
    %615 = vmatpush2.msra.mxu0 0.0
    %616 = vmatprep.subr.mxu0 0.0
    %617 = vmatpush2.msra.mxu0 0.0
    %618 = vmatprep.subr.mxu0 0.0
    %619 = vmatpush2.msra.mxu0 0.0
    %620 = vmatprep.subr.mxu0 0.0
    %621 = vmatpush2.msra.mxu0 0.0
    %622 = vmatprep.subr.mxu0 0.0
    %623 = vmatpush2.msra.mxu0 0.0
    %624 = vmatprep.subr.mxu0 0.0
    %625 = vmatpush2.msra.mxu0 0.0
    %626 = vmatprep.subr.mxu0 0.0
    %627 = vmatpush2.msra.mxu0 0.0
    %628 = vmatprep.subr.mxu0 0.0
    %629 = vmatpush2.msra.mxu0 0.0
    %630 = vmatprep.subr.mxu0 0.0
    %631 = vmatpush2.msra.mxu0 0.0
    %632 = vmatprep.subr.mxu0 0.0
    %633 = vmatpush2.msra.mxu0 0.0
    %634 = vmatprep.subr.mxu0 0.0
    %635 = vmatpush2.msra.mxu0 0.0
    %636 = vmatprep.subr.mxu0 0.0
    %637 = vmatpush2.msra.mxu0 0.0
    %638 = vmatprep.subr.mxu0 0.0
    %639 = vmatpush2.msra.mxu0 0.0
    %640 = vmatprep.subr.mxu0 0.0
    %641 = vmatpush2.msra.mxu0 0.0
    %642 = vmatprep.mubr.f32.mxu0 0.0
    %643 = vmatmul.mubr.f32.gmra.mxu0 %v576
    %v644 = vpop.f32.mrf.mxu0
    %v645 = vadd.f32 0.0, %v644
    %v646 = vpop.f32.mrf.mxu0
    %v647 = vadd.f32 0.0, %v646
    %648 = vdwg.mxu0
    %v651 = vrot.slane %v645, 5
    %v652 = vrot.slane %v647, 5
    %v653 = vrot.slane %v645, 6
    %v654 = vrot.slane %v647, 6
    %v659 = vadd.f32 %v144, %v651
    %v660 = vadd.f32 %v146, %v652
    %v661 = vadd.f32 %v150, %v653
    %v662 = vadd.f32 %v152, %v654
    %v663 = vmul.f32 %v659, %v179
    %v664 = vmul.f32 %v660, %v180
    %v665 = vmul.f32 %v661, %v179
    %v666 = vmul.f32 %v662, %v180
    %v667 = vtanh.pop %v663
    %v668 = vtanh.pop %v664
    %v669 = vtanh.pop %v665
    %v670 = vtanh.pop %v666
    %v671 = vmul.f32 %v667, %v179
    %v672 = vmul.f32 %v668, %v180
    %v673 = vmul.f32 %v669, %v179
    %v674 = vmul.f32 %v670, %v180
    %v675 = vadd.f32 %v671, %v181
    %v676 = vadd.f32 %v672, %v182
    %v677 = vadd.f32 %v673, %v181
    %v678 = vadd.f32 %v674, %v182
    %v681 = vrot.slane %v563, 7
    %v682 = vrot.slane %v564, 7
    %v685 = vmul.f32 %v675, %v681
    %v686 = vmul.f32 %v677, %v682
    %v687 = vmul.f32 %v675, %v676
    %v688 = vmul.f32 %v677, %v678
    %691 = vrot.lane.b32.xlu0 %v687, 64
    %v692 = vpop.permute.xlu0 %691
    %693 = vrot.lane.b32.xlu0 %v688, 64
    %v694 = vpop.permute.xlu0 %693
    %v697 = vadd.f32 %v685, %v692
    %v698 = vadd.f32 %v686, %v694
    %v699 = vtanh.pop %v697
    %v700 = vtanh.pop %v698
    %v701 = vmul.f32 %v676, %v699
    %v702 = vmul.f32 %v678, %v700
    %v705 = vrot.slane %v701, 3
    %v706 = vrot.slane %v702, 2
    %v707 = vsel %vm307, %v706, %v705
    %708 = vrot.lane.b32.xlu0 %v707, 64
    %v709 = vpop.permute.xlu0 %708
    %v710 = vsel %vm183, %v709, 0
    %712 = vmatprep.subr.mxu0 0.0
    %713 = vmatpush1.msra.mxu0 0.0
    %714 = vmatprep.subr.mxu0 0.0
    %715 = vmatpush1.msra.mxu0 0.0
    %716 = vmatprep.subr.mxu0 0.0
    %717 = vmatpush1.msra.mxu0 0.0
    %718 = vmatprep.subr.mxu0 0.0
    %719 = vmatpush1.msra.mxu0 0.0
    %720 = vmatprep.subr.mxu0 0.0
    %721 = vmatpush1.msra.mxu0 0.0
    %722 = vmatprep.subr.mxu0 0.0
    %723 = vmatpush1.msra.mxu0 0.0
    %724 = vmatprep.subr.mxu0 0.0
    %725 = vmatpush1.msra.mxu0 0.0
    %726 = vmatprep.subr.mxu0 0.0
    %727 = vmatpush1.msra.mxu0 0.0
    %728 = vmatprep.subr.mxu0 %v169
    %729 = vmatpush1.msra.mxu0 %v168
    %730 = vmatprep.subr.mxu0 %v167
    %731 = vmatpush1.msra.mxu0 %v166
    %732 = vmatprep.subr.mxu0 %v165
    %733 = vmatpush1.msra.mxu0 %v164
    %734 = vmatprep.subr.mxu0 %v163
    %735 = vmatpush1.msra.mxu0 %v162
    %736 = vmatprep.subr.mxu0 %v161
    %737 = vmatpush1.msra.mxu0 %v160
    %738 = vmatprep.subr.mxu0 %v159
    %739 = vmatpush1.msra.mxu0 %v158
    %740 = vmatprep.subr.mxu0 %v157
    %741 = vmatpush1.msra.mxu0 %v156
    %742 = vmatprep.subr.mxu0 %v155
    %743 = vmatpush1.msra.mxu0 %v154
    %744 = vmatprep.subr.mxu0 0.0
    %745 = vmatpush2.msra.mxu0 0.0
    %746 = vmatprep.subr.mxu0 0.0
    %747 = vmatpush2.msra.mxu0 0.0
    %748 = vmatprep.subr.mxu0 0.0
    %749 = vmatpush2.msra.mxu0 0.0
    %750 = vmatprep.subr.mxu0 0.0
    %751 = vmatpush2.msra.mxu0 0.0
    %752 = vmatprep.subr.mxu0 0.0
    %753 = vmatpush2.msra.mxu0 0.0
    %754 = vmatprep.subr.mxu0 0.0
    %755 = vmatpush2.msra.mxu0 0.0
    %756 = vmatprep.subr.mxu0 0.0
    %757 = vmatpush2.msra.mxu0 0.0
    %758 = vmatprep.subr.mxu0 0.0
    %759 = vmatpush2.msra.mxu0 0.0
    %760 = vmatprep.subr.mxu0 0.0
    %761 = vmatpush2.msra.mxu0 0.0
    %762 = vmatprep.subr.mxu0 0.0
    %763 = vmatpush2.msra.mxu0 0.0
    %764 = vmatprep.subr.mxu0 0.0
    %765 = vmatpush2.msra.mxu0 0.0
    %766 = vmatprep.subr.mxu0 0.0
    %767 = vmatpush2.msra.mxu0 0.0
    %768 = vmatprep.subr.mxu0 0.0
    %769 = vmatpush2.msra.mxu0 0.0
    %770 = vmatprep.subr.mxu0 0.0
    %771 = vmatpush2.msra.mxu0 0.0
    %772 = vmatprep.subr.mxu0 0.0
    %773 = vmatpush2.msra.mxu0 0.0
    %774 = vmatprep.subr.mxu0 0.0
    %775 = vmatpush2.msra.mxu0 0.0
    %776 = vmatprep.mubr.f32.mxu0 0.0
    %777 = vmatmul.mubr.f32.gmra.mxu0 %v710
    %v778 = vpop.f32.mrf.mxu0
    %v779 = vadd.f32 0.0, %v778
    %v780 = vpop.f32.mrf.mxu0
    %v781 = vadd.f32 0.0, %v780
    %782 = vdwg.mxu0
    %v785 = vrot.slane %v779, 4
    %v786 = vrot.slane %v781, 4
    %v787 = vrot.slane %v779, 5
    %v788 = vrot.slane %v781, 5
    %v793 = vadd.f32 %v144, %v785
    %v794 = vadd.f32 %v146, %v786
    %v795 = vadd.f32 %v150, %v787
    %v796 = vadd.f32 %v152, %v788
    %v797 = vmul.f32 %v793, %v179
    %v798 = vmul.f32 %v794, %v180
    %v799 = vmul.f32 %v795, %v179
    %v800 = vmul.f32 %v796, %v180
    %v801 = vtanh.pop %v797
    %v802 = vtanh.pop %v798
    %v803 = vtanh.pop %v799
    %v804 = vtanh.pop %v800
    %v805 = vmul.f32 %v801, %v179
    %v806 = vmul.f32 %v802, %v180
    %v807 = vmul.f32 %v803, %v179
    %v808 = vmul.f32 %v804, %v180
    %v809 = vadd.f32 %v805, %v181
    %v810 = vadd.f32 %v806, %v182
    %v811 = vadd.f32 %v807, %v181
    %v812 = vadd.f32 %v808, %v182
    %v815 = vrot.slane %v697, 7
    %v816 = vrot.slane %v698, 7
    %v819 = vmul.f32 %v809, %v815
    %v820 = vmul.f32 %v811, %v816
    %v821 = vmul.f32 %v809, %v810
    %v822 = vmul.f32 %v811, %v812
    %825 = vrot.lane.b32.xlu0 %v821, 64
    %v826 = vpop.permute.xlu0 %825
    %827 = vrot.lane.b32.xlu0 %v822, 64
    %v828 = vpop.permute.xlu0 %827
    %v831 = vadd.f32 %v819, %v826
    %v832 = vadd.f32 %v820, %v828
    %v833 = vtanh.pop %v831
    %v834 = vtanh.pop %v832
    %v835 = vmul.f32 %v810, %v833
    %v836 = vmul.f32 %v812, %v834
    %v839 = vrot.slane %v835, 4
    %v840 = vrot.slane %v836, 3
    %v841 = vsel %vm307, %v840, %v839
    %842 = vrot.lane.b32.xlu0 %v841, 64
    %v843 = vpop.permute.xlu0 %842
    %v844 = vsel %vm183, %v843, 0
    %846 = vmatprep.subr.mxu0 0.0
    %847 = vmatpush1.msra.mxu0 0.0
    %848 = vmatprep.subr.mxu0 0.0
    %849 = vmatpush1.msra.mxu0 0.0
    %850 = vmatprep.subr.mxu0 0.0
    %851 = vmatpush1.msra.mxu0 0.0
    %852 = vmatprep.subr.mxu0 0.0
    %853 = vmatpush1.msra.mxu0 0.0
    %854 = vmatprep.subr.mxu0 0.0
    %855 = vmatpush1.msra.mxu0 0.0
    %856 = vmatprep.subr.mxu0 0.0
    %857 = vmatpush1.msra.mxu0 0.0
    %858 = vmatprep.subr.mxu0 0.0
    %859 = vmatpush1.msra.mxu0 0.0
    %860 = vmatprep.subr.mxu0 0.0
    %861 = vmatpush1.msra.mxu0 0.0
    %862 = vmatprep.subr.mxu0 %v169
    %863 = vmatpush1.msra.mxu0 %v168
    %864 = vmatprep.subr.mxu0 %v167
    %865 = vmatpush1.msra.mxu0 %v166
    %866 = vmatprep.subr.mxu0 %v165
    %867 = vmatpush1.msra.mxu0 %v164
    %868 = vmatprep.subr.mxu0 %v163
    %869 = vmatpush1.msra.mxu0 %v162
    %870 = vmatprep.subr.mxu0 %v161
    %871 = vmatpush1.msra.mxu0 %v160
    %872 = vmatprep.subr.mxu0 %v159
    %873 = vmatpush1.msra.mxu0 %v158
    %874 = vmatprep.subr.mxu0 %v157
    %875 = vmatpush1.msra.mxu0 %v156
    %876 = vmatprep.subr.mxu0 %v155
    %877 = vmatpush1.msra.mxu0 %v154
    %878 = vmatprep.subr.mxu0 0.0
    %879 = vmatpush2.msra.mxu0 0.0
    %880 = vmatprep.subr.mxu0 0.0
    %881 = vmatpush2.msra.mxu0 0.0
    %882 = vmatprep.subr.mxu0 0.0
    %883 = vmatpush2.msra.mxu0 0.0
    %884 = vmatprep.subr.mxu0 0.0
    %885 = vmatpush2.msra.mxu0 0.0
    %886 = vmatprep.subr.mxu0 0.0
    %887 = vmatpush2.msra.mxu0 0.0
    %888 = vmatprep.subr.mxu0 0.0
    %889 = vmatpush2.msra.mxu0 0.0
    %890 = vmatprep.subr.mxu0 0.0
    %891 = vmatpush2.msra.mxu0 0.0
    %892 = vmatprep.subr.mxu0 0.0
    %893 = vmatpush2.msra.mxu0 0.0
    %894 = vmatprep.subr.mxu0 0.0
    %895 = vmatpush2.msra.mxu0 0.0
    %896 = vmatprep.subr.mxu0 0.0
    %897 = vmatpush2.msra.mxu0 0.0
    %898 = vmatprep.subr.mxu0 0.0
    %899 = vmatpush2.msra.mxu0 0.0
    %900 = vmatprep.subr.mxu0 0.0
    %901 = vmatpush2.msra.mxu0 0.0
    %902 = vmatprep.subr.mxu0 0.0
    %903 = vmatpush2.msra.mxu0 0.0
    %904 = vmatprep.subr.mxu0 0.0
    %905 = vmatpush2.msra.mxu0 0.0
    %906 = vmatprep.subr.mxu0 0.0
    %907 = vmatpush2.msra.mxu0 0.0
    %908 = vmatprep.subr.mxu0 0.0
    %909 = vmatpush2.msra.mxu0 0.0
    %910 = vmatprep.mubr.f32.mxu0 0.0
    %911 = vmatmul.mubr.f32.gmra.mxu0 %v844
    %v912 = vpop.f32.mrf.mxu0
    %v913 = vadd.f32 0.0, %v912
    %v914 = vpop.f32.mrf.mxu0
    %v915 = vadd.f32 0.0, %v914
    %916 = vdwg.mxu0
    %v919 = vrot.slane %v913, 3
    %v920 = vrot.slane %v915, 3
    %v921 = vrot.slane %v913, 4
    %v922 = vrot.slane %v915, 4
    %v927 = vadd.f32 %v144, %v919
    %v928 = vadd.f32 %v146, %v920
    %v929 = vadd.f32 %v150, %v921
    %v930 = vadd.f32 %v152, %v922
    %v931 = vmul.f32 %v927, %v179
    %v932 = vmul.f32 %v928, %v180
    %v933 = vmul.f32 %v929, %v179
    %v934 = vmul.f32 %v930, %v180
    %v935 = vtanh.pop %v931
    %v936 = vtanh.pop %v932
    %v937 = vtanh.pop %v933
    %v938 = vtanh.pop %v934
    %v939 = vmul.f32 %v935, %v179
    %v940 = vmul.f32 %v936, %v180
    %v941 = vmul.f32 %v937, %v179
    %v942 = vmul.f32 %v938, %v180
    %v943 = vadd.f32 %v939, %v181
    %v944 = vadd.f32 %v940, %v182
    %v945 = vadd.f32 %v941, %v181
    %v946 = vadd.f32 %v942, %v182
    %v949 = vrot.slane %v831, 7
    %v950 = vrot.slane %v832, 7
    %v953 = vmul.f32 %v943, %v949
    %v954 = vmul.f32 %v945, %v950
    %v955 = vmul.f32 %v943, %v944
    %v956 = vmul.f32 %v945, %v946
    %959 = vrot.lane.b32.xlu0 %v955, 64
    %v960 = vpop.permute.xlu0 %959
    %961 = vrot.lane.b32.xlu0 %v956, 64
    %v962 = vpop.permute.xlu0 %961
    %v965 = vadd.f32 %v953, %v960
    %v966 = vadd.f32 %v954, %v962
    %v967 = vtanh.pop %v965
    %v968 = vtanh.pop %v966
    %v969 = vmul.f32 %v944, %v967
    %v970 = vmul.f32 %v946, %v968
    %v973 = vrot.slane %v969, 5
    %v974 = vrot.slane %v970, 4
    %v975 = vsel %vm307, %v974, %v973
    %976 = vrot.lane.b32.xlu0 %v975, 64
    %v977 = vpop.permute.xlu0 %976
    %v978 = vsel %vm183, %v977, 0
    %980 = vmatprep.subr.mxu0 0.0
    %981 = vmatpush1.msra.mxu0 0.0
    %982 = vmatprep.subr.mxu0 0.0
    %983 = vmatpush1.msra.mxu0 0.0
    %984 = vmatprep.subr.mxu0 0.0
    %985 = vmatpush1.msra.mxu0 0.0
    %986 = vmatprep.subr.mxu0 0.0
    %987 = vmatpush1.msra.mxu0 0.0
    %988 = vmatprep.subr.mxu0 0.0
    %989 = vmatpush1.msra.mxu0 0.0
    %990 = vmatprep.subr.mxu0 0.0
    %991 = vmatpush1.msra.mxu0 0.0
    %992 = vmatprep.subr.mxu0 0.0
    %993 = vmatpush1.msra.mxu0 0.0
    %994 = vmatprep.subr.mxu0 0.0
    %995 = vmatpush1.msra.mxu0 0.0
    %996 = vmatprep.subr.mxu0 %v169
    %997 = vmatpush1.msra.mxu0 %v168
    %998 = vmatprep.subr.mxu0 %v167
    %999 = vmatpush1.msra.mxu0 %v166
    %1000 = vmatprep.subr.mxu0 %v165
    %1001 = vmatpush1.msra.mxu0 %v164
    %1002 = vmatprep.subr.mxu0 %v163
    %1003 = vmatpush1.msra.mxu0 %v162
    %1004 = vmatprep.subr.mxu0 %v161
    %1005 = vmatpush1.msra.mxu0 %v160
    %1006 = vmatprep.subr.mxu0 %v159
    %1007 = vmatpush1.msra.mxu0 %v158
    %1008 = vmatprep.subr.mxu0 %v157
    %1009 = vmatpush1.msra.mxu0 %v156
    %1010 = vmatprep.subr.mxu0 %v155
    %1011 = vmatpush1.msra.mxu0 %v154
    %1012 = vmatprep.subr.mxu0 0.0
    %1013 = vmatpush2.msra.mxu0 0.0
    %1014 = vmatprep.subr.mxu0 0.0
    %1015 = vmatpush2.msra.mxu0 0.0
    %1016 = vmatprep.subr.mxu0 0.0
    %1017 = vmatpush2.msra.mxu0 0.0
    %1018 = vmatprep.subr.mxu0 0.0
    %1019 = vmatpush2.msra.mxu0 0.0
    %1020 = vmatprep.subr.mxu0 0.0
    %1021 = vmatpush2.msra.mxu0 0.0
    %1022 = vmatprep.subr.mxu0 0.0
    %1023 = vmatpush2.msra.mxu0 0.0
    %1024 = vmatprep.subr.mxu0 0.0
    %1025 = vmatpush2.msra.mxu0 0.0
    %1026 = vmatprep.subr.mxu0 0.0
    %1027 = vmatpush2.msra.mxu0 0.0
    %1028 = vmatprep.subr.mxu0 0.0
    %1029 = vmatpush2.msra.mxu0 0.0
    %1030 = vmatprep.subr.mxu0 0.0
    %1031 = vmatpush2.msra.mxu0 0.0
    %1032 = vmatprep.subr.mxu0 0.0
    %1033 = vmatpush2.msra.mxu0 0.0
    %1034 = vmatprep.subr.mxu0 0.0
    %1035 = vmatpush2.msra.mxu0 0.0
    %1036 = vmatprep.subr.mxu0 0.0
    %1037 = vmatpush2.msra.mxu0 0.0
    %1038 = vmatprep.subr.mxu0 0.0
    %1039 = vmatpush2.msra.mxu0 0.0
    %1040 = vmatprep.subr.mxu0 0.0
    %1041 = vmatpush2.msra.mxu0 0.0
    %1042 = vmatprep.subr.mxu0 0.0
    %1043 = vmatpush2.msra.mxu0 0.0
    %1044 = vmatprep.mubr.f32.mxu0 0.0
    %1045 = vmatmul.mubr.f32.gmra.mxu0 %v978
    %v1046 = vpop.f32.mrf.mxu0
    %v1047 = vadd.f32 0.0, %v1046
    %v1048 = vpop.f32.mrf.mxu0
    %v1049 = vadd.f32 0.0, %v1048
    %1050 = vdwg.mxu0
    %v1053 = vrot.slane %v1047, 2
    %v1054 = vrot.slane %v1049, 2
    %v1055 = vrot.slane %v1047, 3
    %v1056 = vrot.slane %v1049, 3
    %v1061 = vadd.f32 %v144, %v1053
    %v1062 = vadd.f32 %v146, %v1054
    %v1063 = vadd.f32 %v150, %v1055
    %v1064 = vadd.f32 %v152, %v1056
    %v1065 = vmul.f32 %v1061, %v179
    %v1066 = vmul.f32 %v1062, %v180
    %v1067 = vmul.f32 %v1063, %v179
    %v1068 = vmul.f32 %v1064, %v180
    %v1069 = vtanh.pop %v1065
    %v1070 = vtanh.pop %v1066
    %v1071 = vtanh.pop %v1067
    %v1072 = vtanh.pop %v1068
    %v1073 = vmul.f32 %v1069, %v179
    %v1074 = vmul.f32 %v1070, %v180
    %v1075 = vmul.f32 %v1071, %v179
    %v1076 = vmul.f32 %v1072, %v180
    %v1077 = vadd.f32 %v1073, %v181
    %v1078 = vadd.f32 %v1074, %v182
    %v1079 = vadd.f32 %v1075, %v181
    %v1080 = vadd.f32 %v1076, %v182
    %v1083 = vrot.slane %v965, 7
    %v1084 = vrot.slane %v966, 7
    %v1087 = vmul.f32 %v1077, %v1083
    %v1088 = vmul.f32 %v1079, %v1084
    %v1089 = vmul.f32 %v1077, %v1078
    %v1090 = vmul.f32 %v1079, %v1080
    %1093 = vrot.lane.b32.xlu0 %v1089, 64
    %v1094 = vpop.permute.xlu0 %1093
    %1095 = vrot.lane.b32.xlu0 %v1090, 64
    %v1096 = vpop.permute.xlu0 %1095
    %v1099 = vadd.f32 %v1087, %v1094
    %v1100 = vadd.f32 %v1088, %v1096
    %v1101 = vtanh.pop %v1099
    %v1102 = vtanh.pop %v1100
    %v1103 = vmul.f32 %v1078, %v1101
    %v1104 = vmul.f32 %v1080, %v1102
    %v1107 = vrot.slane %v1103, 6
    %v1108 = vrot.slane %v1104, 5
    %v1109 = vsel %vm307, %v1108, %v1107
    %1110 = vrot.lane.b32.xlu0 %v1109, 64
    %v1111 = vpop.permute.xlu0 %1110
    %v1112 = vsel %vm183, %v1111, 0
    %1114 = vmatprep.subr.mxu0 0.0
    %1115 = vmatpush1.msra.mxu0 0.0
    %1116 = vmatprep.subr.mxu0 0.0
    %1117 = vmatpush1.msra.mxu0 0.0
    %1118 = vmatprep.subr.mxu0 0.0
    %1119 = vmatpush1.msra.mxu0 0.0
    %1120 = vmatprep.subr.mxu0 0.0
    %1121 = vmatpush1.msra.mxu0 0.0
    %1122 = vmatprep.subr.mxu0 0.0
    %1123 = vmatpush1.msra.mxu0 0.0
    %1124 = vmatprep.subr.mxu0 0.0
    %1125 = vmatpush1.msra.mxu0 0.0
    %1126 = vmatprep.subr.mxu0 0.0
    %1127 = vmatpush1.msra.mxu0 0.0
    %1128 = vmatprep.subr.mxu0 0.0
    %1129 = vmatpush1.msra.mxu0 0.0
    %1130 = vmatprep.subr.mxu0 %v169
    %1131 = vmatpush1.msra.mxu0 %v168
    %1132 = vmatprep.subr.mxu0 %v167
    %1133 = vmatpush1.msra.mxu0 %v166
    %1134 = vmatprep.subr.mxu0 %v165
    %1135 = vmatpush1.msra.mxu0 %v164
    %1136 = vmatprep.subr.mxu0 %v163
    %1137 = vmatpush1.msra.mxu0 %v162
    %1138 = vmatprep.subr.mxu0 %v161
    %1139 = vmatpush1.msra.mxu0 %v160
    %1140 = vmatprep.subr.mxu0 %v159
    %1141 = vmatpush1.msra.mxu0 %v158
    %1142 = vmatprep.subr.mxu0 %v157
    %1143 = vmatpush1.msra.mxu0 %v156
    %1144 = vmatprep.subr.mxu0 %v155
    %1145 = vmatpush1.msra.mxu0 %v154
    %1146 = vmatprep.subr.mxu0 0.0
    %1147 = vmatpush2.msra.mxu0 0.0
    %1148 = vmatprep.subr.mxu0 0.0
    %1149 = vmatpush2.msra.mxu0 0.0
    %1150 = vmatprep.subr.mxu0 0.0
    %1151 = vmatpush2.msra.mxu0 0.0
    %1152 = vmatprep.subr.mxu0 0.0
    %1153 = vmatpush2.msra.mxu0 0.0
    %1154 = vmatprep.subr.mxu0 0.0
    %1155 = vmatpush2.msra.mxu0 0.0
    %1156 = vmatprep.subr.mxu0 0.0
    %1157 = vmatpush2.msra.mxu0 0.0
    %1158 = vmatprep.subr.mxu0 0.0
    %1159 = vmatpush2.msra.mxu0 0.0
    %1160 = vmatprep.subr.mxu0 0.0
    %1161 = vmatpush2.msra.mxu0 0.0
    %1162 = vmatprep.subr.mxu0 0.0
    %1163 = vmatpush2.msra.mxu0 0.0
    %1164 = vmatprep.subr.mxu0 0.0
    %1165 = vmatpush2.msra.mxu0 0.0
    %1166 = vmatprep.subr.mxu0 0.0
    %1167 = vmatpush2.msra.mxu0 0.0
    %1168 = vmatprep.subr.mxu0 0.0
    %1169 = vmatpush2.msra.mxu0 0.0
    %1170 = vmatprep.subr.mxu0 0.0
    %1171 = vmatpush2.msra.mxu0 0.0
    %1172 = vmatprep.subr.mxu0 0.0
    %1173 = vmatpush2.msra.mxu0 0.0
    %1174 = vmatprep.subr.mxu0 0.0
    %1175 = vmatpush2.msra.mxu0 0.0
    %1176 = vmatprep.subr.mxu0 0.0
    %1177 = vmatpush2.msra.mxu0 0.0
    %1178 = vmatprep.mubr.f32.mxu0 0.0
    %1179 = vmatmul.mubr.f32.gmra.mxu0 %v1112
    %v1180 = vpop.f32.mrf.mxu0
    %v1181 = vadd.f32 0.0, %v1180
    %v1182 = vpop.f32.mrf.mxu0
    %v1183 = vadd.f32 0.0, %v1182
    %1184 = vdwg.mxu0
    %v1187 = vrot.slane %v1181, 1
    %v1188 = vrot.slane %v1183, 1
    %v1189 = vrot.slane %v1181, 2
    %v1190 = vrot.slane %v1183, 2
    %v1195 = vadd.f32 %v144, %v1187
    %v1196 = vadd.f32 %v146, %v1188
    %v1197 = vadd.f32 %v150, %v1189
    %v1198 = vadd.f32 %v152, %v1190
    %v1199 = vmul.f32 %v1195, %v179
    %v1200 = vmul.f32 %v1196, %v180
    %v1201 = vmul.f32 %v1197, %v179
    %v1202 = vmul.f32 %v1198, %v180
    %v1203 = vtanh.pop %v1199
    %v1204 = vtanh.pop %v1200
    %v1205 = vtanh.pop %v1201
    %v1206 = vtanh.pop %v1202
    %v1207 = vmul.f32 %v1203, %v179
    %v1208 = vmul.f32 %v1204, %v180
    %v1209 = vmul.f32 %v1205, %v179
    %v1210 = vmul.f32 %v1206, %v180
    %v1211 = vadd.f32 %v1207, %v181
    %v1212 = vadd.f32 %v1208, %v182
    %v1213 = vadd.f32 %v1209, %v181
    %v1214 = vadd.f32 %v1210, %v182
    %v1217 = vrot.slane %v1099, 7
    %v1218 = vrot.slane %v1100, 7
    %v1221 = vmul.f32 %v1211, %v1217
    %v1222 = vmul.f32 %v1213, %v1218
    %v1223 = vmul.f32 %v1211, %v1212
    %v1224 = vmul.f32 %v1213, %v1214
    %1227 = vrot.lane.b32.xlu0 %v1223, 64
    %v1228 = vpop.permute.xlu0 %1227
    %1229 = vrot.lane.b32.xlu0 %v1224, 64
    %v1230 = vpop.permute.xlu0 %1229
    %v1233 = vadd.f32 %v1221, %v1228
    %v1234 = vadd.f32 %v1222, %v1230
    %v1235 = vtanh.pop %v1233
    %v1236 = vtanh.pop %v1234
    %v1237 = vmul.f32 %v1212, %v1235
    %v1238 = vmul.f32 %v1214, %v1236
    %vm1239 = vcmask 1040384
    %v1240 = vsel %vm1239, %v302, %v434
    %v1241 = vsel %vm1239, %v303, %v435
    %vm1242 = vcmask 1041408
    %v1243 = vsel %vm1242, %v1240, %v567
    %v1244 = vsel %vm1242, %v1241, %v568
    %vm1245 = vcmask 1042432
    %v1246 = vsel %vm1245, %v1243, %v701
    %v1247 = vsel %vm1245, %v1244, %v702
    %vm1248 = vcmask 1043456
    %v1249 = vsel %vm1248, %v1246, %v835
    %v1250 = vsel %vm1248, %v1247, %v836
    %vm1251 = vcmask 1044480
    %v1252 = vsel %vm1251, %v1249, %v969
    %v1253 = vsel %vm1251, %v1250, %v970
    %v1254 = vsel %vm70, %v1252, %v1103
    %v1255 = vsel %vm70, %v1253, %v1104
    %vm1256 = vcmask 1046528
    %v1257 = vsel %vm1256, %v1254, %v1237
    %v1258 = vsel %vm1256, %v1255, %v1238
    %v1259 = vld [vmem:[%s4] sm:$0x1]
    %v1261 = vlaneseq
    %v1262 = vshrl.u32 %v1261, 7
    %v1263 = vsub.s32 0, %v1262
    %v1264 = vrot.slane %v1259, %v1263
    %1265 = vrot.lane.b32.xlu0 %v1264, 64
    %v1266 = vpop.permute.xlu0 %1265
    %v1268 = vmul.f32 %v1257, %v1266
    %v1269 = vmul.f32 %v1258, %v1266
    %1272 = vrot.lane.b32.xlu0 %v1268, 64
    %v1273 = vpop.permute.xlu0 %1272
    %1274 = vrot.lane.b32.xlu0 %v1269, 64
    %v1275 = vpop.permute.xlu0 %1274
    %v1278 = vsel %vm183, %v1273, 0.0
    %1279 = vadd.xlane.f32.xlu0 %v1278
    %v1280 = vpop.xlane.xlu0 %1279
    %v1281 = vsel %vm183, %v1275, 0.0
    %1282 = vadd.xlane.f32.xlu0 %v1281
    %v1283 = vpop.xlane.xlu0 %1282
    %v1284 = vld [vmem:[#allocation2] sm:$0x1]
    %v1286 = vlaneseq
    %v1287 = vshrl.u32 %v1286, 7
    %v1288 = vsub.s32 0, %v1287
    %v1289 = vrot.slane %v1284, %v1288
    %1290 = vset.pattern.permute.xlu0 0
    %1291 = vperm.xlu0 %1290, %v1289
    %v1292 = vpop.permute.xlu0 %1291
    %v1294 = vadd.f32 %v1280, %v1292
    %v1295 = vadd.f32 %v1283, %v1292
    %v1298 = vlaneseq
    %v1299 = vshrl.u32 %v1298, 7
    %v1300 = vsub.s32 %v171, %v1299
    %v1301 = vrot.slane %v1294, %v1300
    %v1302 = vlaneseq
    %v1303 = vshrl.u32 %v1302, 7
    %v1304 = vsub.s32 %v171, %v1303
    %v1305 = vrot.slane %v1295, %v1304
    %v1306 = vsel %vm307, %v1305, %v1301
    %vm1308 = vcmask 58368
    %v1309 = vsel %vm1308, %v1306, -inf
    %1310 = vmax.xlane.f32.xlu0 %v1309
    %v1311 = vpop.xlane.xlu0 %1310
    %v1313 = vlaneseq
    %v1314 = vshrl.u32 %v1313, 7
    %v1315 = vsub.s32 0, %v1314
    %v1316 = vrot.slane %v1311, %v1315
    %v1317 = vlaneseq
    %v1318 = vshrl.u32 %v1317, 7
    %v1319 = vsub.s32 1, %v1318
    %v1320 = vrot.slane %v1311, %v1319
    %v1323 = vsub.f32 %v1294, %v1316
    %v1324 = vsub.f32 %v1295, %v1320
    %v1325 = vmul.f32 %v1323, 1.442695
    %v1326 = vpow.pop %v1325
    %v1327 = vmul.f32 %v1324, 1.442695
    %v1328 = vpow.pop %v1327
    %1331 = vset.pattern.permute.xlu0 0
    %1332 = vperm.xlu0 %1331, %v1326
    %v1333 = vpop.permute.xlu0 %1332
    %1334 = vset.pattern.permute.xlu0 0
    %1335 = vperm.xlu0 %1334, %v1328
    %v1336 = vpop.permute.xlu0 %1335
    %v1337 = vlaneseq
    %v1338 = vshrl.u32 %v1337, 7
    %v1339 = vsub.s32 %v171, %v1338
    %v1340 = vrot.slane %v1333, %v1339
    %v1341 = vlaneseq
    %v1342 = vshrl.u32 %v1341, 7
    %v1343 = vsub.s32 %v171, %v1342
    %v1344 = vrot.slane %v1336, %v1343
    %v1345 = vsel %vm307, %v1344, %v1340
    %v1347 = vsel %vm1308, %v1345, 0.0
    %1348 = vadd.xlane.f32.xlu0 %v1347
    %v1349 = vpop.xlane.xlu0 %1348
    %v1350 = vrcp.pop %v1349
    %v1351 = vmul.f32 %v1349, %v1350
    %v1352 = vsub.f32 2.0, %v1351
    %v1353 = vmul.f32 %v1350, %v1352
    %v1354 = vmul.f32 %v1349, %v1353
    %v1355 = vsub.f32 2.0, %v1354
    %v1356 = vmul.f32 %v1353, %v1355
    %v1358 = vlaneseq
    %v1359 = vshrl.u32 %v1358, 7
    %v1360 = vsub.s32 0, %v1359
    %v1361 = vrot.slane %v1356, %v1360
    %v1362 = vlaneseq
    %v1363 = vshrl.u32 %v1362, 7
    %v1364 = vsub.s32 1, %v1363
    %v1365 = vrot.slane %v1356, %v1364
    %v1368 = vmul.f32 %v1326, %v1361
    %v1369 = vmul.f32 %v1328, %v1365
    %1371 = vset.pattern.permute.xlu0 0
    %1372 = vperm.xlu0 %1371, %v1368
    %v1373 = vpop.permute.xlu0 %1372
    %1376 = vset.pattern.permute.xlu0 0
    %1377 = vperm.xlu0 %1376, %v1369
    %v1378 = vpop.permute.xlu0 %1377
    %v1380 = vmul.f32 %v1373, %v1257
    %v1381 = vmul.f32 %v1378, %v1258
    %vm1382 = vcmask 1048064
    %v1383 = vsel %vm1382, %v1380, 0.0
    %v1384 = vrot.slane %v1383, 4
    %v1385 = vadd.f32 %v1383, %v1384
    %v1386 = vrot.slane %v1385, 2
    %v1387 = vadd.f32 %v1385, %v1386
    %v1388 = vrot.slane %v1387, 1
    %v1389 = vadd.f32 %v1387, %v1388
    %v1390 = vsel %vm1382, %v1381, 0.0
    %v1391 = vrot.slane %v1390, 4
    %v1392 = vadd.f32 %v1390, %v1391
    %v1393 = vrot.slane %v1392, 2
    %v1394 = vadd.f32 %v1392, %v1393
    %v1395 = vrot.slane %v1394, 1
    %v1396 = vadd.f32 %v1394, %v1395
    %v1397 = vld [vmem:[%s6] sm:$0x1]
    %v1399 = vlaneseq
    %v1400 = vshrl.u32 %v1399, 7
    %v1401 = vsub.s32 0, %v1400
    %v1402 = vrot.slane %v1397, %v1401
    %1403 = vrot.lane.b32.xlu0 %v1402, 64
    %v1404 = vpop.permute.xlu0 %1403
    %v1406 = vmul.f32 %v1389, %v1404
    %v1407 = vmul.f32 %v1396, %v1404
    %v1410 = vrot.slane %v1407, 7
    %v1411 = vsel %vm307, %v1410, %v1406
    %1412 = vrot.lane.b32.xlu0 %v1411, 64
    %v1413 = vpop.permute.xlu0 %1412
    %vm1415 = vcmask 517120
    %v1416 = vsel %vm1415, %v1413, 0.0
    %1417 = vadd.xlane.f32.xlu0 %v1416
    %v1418 = vpop.xlane.xlu0 %1417
    %v1419 = vld [vmem:[#allocation3] sm:$0x1]
    %v1421 = vlaneseq
    %v1422 = vshrl.u32 %v1421, 7
    %v1423 = vsub.s32 0, %v1422
    %v1424 = vrot.slane %v1419, %v1423
    %v1426 = vadd.f32 %v1418, %v1424
    %vm1427 = vcmask 1024
    %1428 = vst.msk [vmem:[%s8] sm:$0x3] %vm1427, %v1426
    // Predicated region
    $region38: #{tpu_custom_call.1} parent=1 // pred_check
      _
    $region39: #{tpu_custom_call.1} parent=1 // pred_check_branch
      %1430 = sbr.rel (0) target = $region41
    $region40: #{tpu_custom_call.1} parent=1 // pred_region
      _
    $region41: #{tpu_custom_call.1} parent=1 // pred_fallthru
      _
    // Predicated region
    $region42: #{tpu_custom_call.1} parent=1 // pred_check
      _
    $region43: #{tpu_custom_call.1} parent=1 // pred_check_branch
      %1432 = sbr.rel (0) target = $region45
    $region44: #{tpu_custom_call.1} parent=1 // pred_region
      _
    $region45: #{tpu_custom_call.1} parent=1 // pred_fallthru
      _
    %1433 = vsyncpa [#allocation5], 1

</llo_original>
